<compile_context>
chip_gen: v5e
topology: v5e:2x2
jax: 0.10.0
libtpu: 0.0.40
codegen_flags: <defaults>
</compile_context>

<pallas_src>
import functools

import jax
import jax.numpy as jnp
from jax.experimental import pallas as pl
from jax.experimental.pallas import tpu as pltpu


# ---------------------------------------------------------------------------
# helpers
# ---------------------------------------------------------------------------

def _round_up(x, m):
    return (x + m - 1) // m * m


# ConvTranspose2d(k=4, s=2, p=1) phase decomposition (per spatial axis):
#   out[2y + 0] = x[y-1]*W[3] + x[y]*W[1]     (window [y-1, y], taps (3, 1))
#   out[2y + 1] = x[y]  *W[2] + x[y+1]*W[0]   (window [y, y+1], taps (2, 0))
_KMAP = ((3, 1), (2, 0))      # parity -> kernel tap for window slot d
_WSTART = ((0, 1), (1, 2))    # parity -> slice start in 1-padded coords


def _phase_patches(x):
    """x: (..., B, H, W, C) -> (4, ..., B*H*W, 4*C) phase-wise 2x2 im2col patches.

    Phase p = py*2 + px produces output pixels (2y+py, 2x+px).  Patch column order
    is (dy, dx, c), matching _phase_weight_mats.  dtype (bf16) is preserved, so the
    amplified patch buffers are built directly in bf16.
    """
    *lead, b, h, w, c = x.shape
    pad = [(0, 0)] * (len(lead) + 1) + [(1, 1), (1, 1), (0, 0)]
    xp = jnp.pad(x, pad)
    phases = []
    for py in range(2):
        for px in range(2):
            taps = []
            for dy in range(2):
                for dx in range(2):
                    y0, x0 = _WSTART[py][dy], _WSTART[px][dx]
                    taps.append(xp[..., y0:y0 + h, x0:x0 + w, :])
            p = jnp.stack(taps, axis=-2)                        # (..., B, H, W, 4, C)
            phases.append(p.reshape(*lead, b * h * w, 4 * c))
    return jnp.stack(phases, axis=0)                            # (4, ..., B*H*W, 4*C)


def _phase_weight_mats(w):
    """torch ConvTranspose2d weight (C_in, C_out, 4, 4) -> (4, 4*C_in, C_out)
    phase-wise matmul weights, row order (dy, dx, c_in) matching _phase_patches."""
    mats = []
    for py in range(2):
        for px in range(2):
            rows = []
            for dy in range(2):
                for dx in range(2):
                    rows.append(w[:, :, _KMAP[py][dy], _KMAP[px][dx]])
            mats.append(jnp.concatenate(rows, axis=0))
    return jnp.stack(mats, axis=0)


# ---------------------------------------------------------------------------
# VMEM-aware tiling
# ---------------------------------------------------------------------------

def _vmem_limits():
    """Return (vmem_limit_bytes, per-step working-set budget).

    v5e/v6e have 128 MiB VMEM per TensorCore, v7x only 64 MiB -> derive the scoped
    limit from the detected capacity so a v6e-tuned tile cannot blow up on v7x.
    """
    cap = None
    try:
        cap = int(getattr(pltpu.get_tpu_info(), "vmem_capacity_bytes", 0)) or None
    except Exception:
        cap = None
    if cap is None:
        cap = 64 * 1024 * 1024                                  # assume tightest (v7x)
    limit = max(min(cap // 2, 64 * 1024 * 1024), 32 * 1024 * 1024)
    return limit, limit - 8 * 1024 * 1024                       # margin for scratch


def _pick_m_tile(m, kr, kg, n_green, npad, budget):
    """Largest m_tile whose double-buffered bf16 working set (patches + weights +
    output + f32 accumulator values) fits the VMEM budget.  Tiny problems are not
    padded past round_up(m, 32)."""
    nall = (n_green + 1) * npad
    lane = lambda k: _round_up(max(k, 1), 128)                  # lane padding of small K
    fixed = 2 * 2 * (lane(kr) * nall + n_green * lane(kg) * npad)      # weights (x2 buf)
    per_row = (2 * 2 * (lane(kr) + n_green * lane(kg) + nall)          # patches + bf16 out
               + 4 * (nall + npad))                                    # f32 accum values
    cap_rows = max((budget - fixed) // per_row, 32)
    m_tile = 32
    for cand in (2048, 1024, 512, 256, 128, 64, 32):
        if cand <= cap_rows:
            m_tile = cand
            break
    return int(min(m_tile, _round_up(m, 32)))


# ---------------------------------------------------------------------------
# Pallas kernels
# ---------------------------------------------------------------------------

def _conv_stats_kernel(pr_ref, wr_ref, pg_ref, wg_ref, st_ref, *, n_green, npad):
    """Pass 1 (BatchNorm stats only, nothing big written to HBM).

    red = P_red @ W_red_all        (bf16 x bf16 -> f32 acc, full N = n_units*Npad)
    per unit u: y_u = red[:, u] (+ P_green[u] @ Wg[u] for green units)
    st row 0 = per-channel sum over tile rows, row 1 = per-channel sum of squares.
    """
    red = jnp.dot(pr_ref[...], wr_ref[...], preferred_element_type=jnp.float32)
    s1, s2 = [], []
    for u in range(n_green + 1):
        y = red[:, u * npad:(u + 1) * npad]
        if u < n_green:
            y = y + jnp.dot(pg_ref[u], wg_ref[u], preferred_element_type=jnp.float32)
        s1.append(jnp.sum(y, axis=0, keepdims=True))
        s2.append(jnp.sum(y * y, axis=0, keepdims=True))
    st_ref[...] = jnp.concatenate(
        [jnp.concatenate(s1, axis=-1), jnp.concatenate(s2, axis=-1)], axis=0)


def _conv_out_kernel(pr_ref, wr_ref, pg_ref, wg_ref, sc_ref, sh_ref, o_ref,
                     *, n_green, npad, act):
    """Pass 2: recompute the conv (MXU has slack at this K/N), apply the BatchNorm
    scale/shift + activation in f32, store the final output bf16 (lane-dense)."""
    red = jnp.dot(pr_ref[...], wr_ref[...], preferred_element_type=jnp.float32)
    outs = []
    for u in range(n_green + 1):
        y = red[:, u * npad:(u + 1) * npad]
        if u < n_green:
            y = y + jnp.dot(pg_ref[u], wg_ref[u], preferred_element_type=jnp.float32)
        y = y * sc_ref[:, u * npad:(u + 1) * npad] + sh_ref[:, u * npad:(u + 1) * npad]
        if act == "relu":
            y = jnp.maximum(y, 0.0)
        elif act == "leaky_relu":
            y = jnp.where(y >= 0.0, y, 0.2 * y)
        elif act == "tanh":
            y = jnp.tanh(y)
        outs.append(y)
    o_ref[...] = jnp.concatenate(outs, axis=-1).astype(o_ref.dtype)


# ---------------------------------------------------------------------------
# pallas_call wrappers
# ---------------------------------------------------------------------------

def _conv_stats_call(p_red, wr_all, p_grn, wg_all, *, m_tile, vmem_limit):
    _, m_pad, kr = p_red.shape
    _, n_green, _, kg = p_grn.shape
    nall = wr_all.shape[-1]
    npad = wg_all.shape[-1]
    n_mt = m_pad // m_tile
    return pl.pallas_call(
        functools.partial(_conv_stats_kernel, n_green=n_green, npad=npad),
        grid=(4, n_mt),
        in_specs=[
            pl.BlockSpec((None, m_tile, kr), lambda p, m: (p, m, 0)),        # red patches
            pl.BlockSpec((None, kr, nall), lambda p, m: (p, 0, 0)),          # W_red_all
            pl.BlockSpec((None, n_green, m_tile, kg), lambda p, m: (p, 0, m, 0)),
            pl.BlockSpec((None, n_green, kg, npad), lambda p, m: (p, 0, 0, 0)),
        ],
        out_specs=pl.BlockSpec((None, None, 2, nall), lambda p, m: (p, m, 0, 0)),
        out_shape=jax.ShapeDtypeStruct((4, n_mt, 2, nall), jnp.float32),
        compiler_params=pltpu.CompilerParams(
            dimension_semantics=("parallel", "parallel"),
            vmem_limit_bytes=vmem_limit),
    )(p_red, wr_all, p_grn, wg_all)


def _conv_out_call(p_red, wr_all, p_grn, wg_all, scale, shift, *, m_tile, act,
                   vmem_limit):
    _, m_pad, kr = p_red.shape
    _, n_green, _, kg = p_grn.shape
    nall = wr_all.shape[-1]
    npad = wg_all.shape[-1]
    n_mt = m_pad // m_tile
    return pl.pallas_call(
        functools.partial(_conv_out_kernel, n_green=n_green, npad=npad, act=act),
        grid=(4, n_mt),
        in_specs=[
            pl.BlockSpec((None, m_tile, kr), lambda p, m: (p, m, 0)),
            pl.BlockSpec((None, kr, nall), lambda p, m: (p, 0, 0)),
            pl.BlockSpec((None, n_green, m_tile, kg), lambda p, m: (p, 0, m, 0)),
            pl.BlockSpec((None, n_green, kg, npad), lambda p, m: (p, 0, 0, 0)),
            pl.BlockSpec((1, nall), lambda p, m: (0, 0)),                     # scale
            pl.BlockSpec((1, nall), lambda p, m: (0, 0)),                     # shift
        ],
        out_specs=pl.BlockSpec((None, m_tile, nall), lambda p, m: (p, m, 0)),
        out_shape=jax.ShapeDtypeStruct((4, m_pad, nall), jnp.bfloat16),
        compiler_params=pltpu.CompilerParams(
            dimension_semantics=("parallel", "parallel"),
            vmem_limit_bytes=vmem_limit),
    )(p_red, wr_all, p_grn, wg_all, scale, shift)


# ---------------------------------------------------------------------------
# one full star-shaped layer (jitted)
# ---------------------------------------------------------------------------

@functools.partial(jax.jit, static_argnames=("use_bn", "act", "c_red", "c_green"))
def _star_layer_forward(x_red, x_greens, wr_all, wg_all, gamma_units, beta_units,
                        *, use_bn, act, c_red, c_green):
    """x_red: (B, Cr, H, W); x_greens: (n_green, B, Cg, H, W).
    wr_all: (4, 4*Cr, n_units*Npad) bf16 (units folded into N; last unit = red conv).
    wg_all: (4, n_green, 4*Cg, Npad) bf16.
    Returns (red_out NCHW f32, tuple of n_green green_out NCHW f32)."""
    n_green, b, _, h, w = x_greens.shape
    kr = wr_all.shape[1]
    kg = wg_all.shape[2]
    npad = wg_all.shape[-1]
    nall = wr_all.shape[-1]
    n_units = n_green + 1
    assert nall == n_units * npad

    # cast to bf16 BEFORE the im2col: amplified patch streams are written/read as bf16
    xr = jnp.transpose(x_red.astype(jnp.bfloat16), (0, 2, 3, 1))         # (B,H,W,Cr)
    xg = jnp.transpose(x_greens.astype(jnp.bfloat16), (0, 1, 3, 4, 2))   # (G,B,H,W,Cg)
    p_red = _phase_patches(xr)                     # (4, M, Kr)        bf16
    p_grn = _phase_patches(xg)                     # (4, G, M, Kg)     bf16

    m = b * h * w
    vmem_limit, budget = _vmem_limits()
    m_tile = _pick_m_tile(m, kr, kg, n_green, npad, budget)
    m_pad = _round_up(m, m_tile)
    if m_pad != m:                                 # zero rows contribute 0 to the stats
        p_red = jnp.pad(p_red, ((0, 0), (0, m_pad - m), (0, 0)))
        p_grn = jnp.pad(p_grn, ((0, 0), (0, 0), (0, m_pad - m), (0, 0)))

    if use_bn:
        stats = _conv_stats_call(p_red, wr_all, p_grn, wg_all,
                                 m_tile=m_tile, vmem_limit=vmem_limit)
        st = stats.sum(axis=(0, 1)).reshape(2, n_units, npad)
        count = 4.0 * m                            # phases * B*H*W samples per channel
        mean = st[0] / count
        # single-pass var in f32; conv has no bias so mean ~ 0 and cancellation is benign
        var = jnp.maximum(st[1] / count - mean * mean, 0.0)
        scale = gamma_units * jax.lax.rsqrt(var + 1e-5)
        shift = beta_units - mean * scale
    else:
        scale = jnp.ones((n_units, npad), jnp.float32)
        shift = jnp.zeros((n_units, npad), jnp.float32)

    y = _conv_out_call(p_red, wr_all, p_grn, wg_all,
                       scale.reshape(1, nall), shift.reshape(1, nall),
                       m_tile=m_tile, act=act, vmem_limit=vmem_limit)
    y = y[:, :m, :]                                # (4, M, Nall) bf16

    # slice to REAL channel counts before the phase interleave / NCHW transpose
    def to_nchw(block, c):
        z = block.astype(jnp.float32).reshape(2, 2, b, h, w, c)   # (py, px, b, h, w, c)
        z = jnp.transpose(z, (2, 5, 3, 0, 4, 1))                  # (b, c, h, py, w, px)
        return z.reshape(b, c, 2 * h, 2 * w)

    out_green = tuple(to_nchw(y[:, :, u * npad:u * npad + c_green], c_green)
                      for u in range(n_green))
    out_red = to_nchw(y[:, :, n_green * npad:n_green * npad + c_red], c_red)
    return out_red, out_green


# ---------------------------------------------------------------------------
# module
# ---------------------------------------------------------------------------

class CnvTranspose2dStarShapePallas:
    """JAX / Pallas-TPU port of CnvTranspose2d_starShape (forward only).

    BatchNorm uses per-call batch statistics (training-mode semantics of a freshly
    constructed torch module), biased variance, eps=1e-5.
    `activation` is None | "relu" | "leaky_relu" | "tanh".
    Returned arrays are f32; the kernel stores its final output in bf16 (one rounding
    step) to halve the largest HBM write stream.
    """

    def __init__(self, n_input_ch, n_output_ch, kernel_size, stride, padding,
                 n_classes, bias=False, red_portion_in=0.5, red_portion_out=0.5,
                 use_batch_norm=True, activation=None, key=None):
        if (kernel_size, stride, padding) != (4, 2, 1):
            # TODO(synk): general (kernel, stride, padding) phase decomposition; the
            # star-shaped DCGAN only uses ConvTranspose2d(4, 2, 1) here.
            raise NotImplementedError("only kernel_size=4, stride=2, padding=1")
        if bias:
            raise NotImplementedError("bias=False in the reference module")
        if activation not in (None, "relu", "leaky_relu", "tanh"):
            raise ValueError("activation must be None/'relu'/'leaky_relu'/'tanh'")

        self.n_input_ch = n_input_ch
        self.n_input_ch_red = int(n_input_ch * red_portion_in)
        self.n_input_ch_green = n_input_ch - self.n_input_ch_red
        self.n_output_ch = n_output_ch
        self.n_output_ch_red = int(n_output_ch * red_portion_out)
        self.n_output_ch_green = n_output_ch - self.n_output_ch_red
        self.n_classes = n_classes
        self.use_batch_norm = use_batch_norm
        self.activation = activation

        key = jax.random.PRNGKey(0) if key is None else key
        keys = jax.random.split(key, 2 * n_classes + 2)

        def convt_w(k, ci, co):
            return 0.02 * jax.random.normal(k, (ci, co, 4, 4), jnp.float32)

        def bn_params(k, c):
            gamma = 1.0 + 0.02 * jax.random.normal(k, (c,), jnp.float32)
            return gamma, jnp.zeros((c,), jnp.float32)

        # raw (torch-layout) parameters
        self.w_red = convt_w(keys[0], self.n_input_ch_red, self.n_output_ch_red)
        self.gamma_red, self.beta_red = bn_params(keys[1], self.n_output_ch_red)
        self.w_green, self.gamma_green, self.beta_green = [], [], []
        for i in range(n_classes):
            self.w_green.append(
                convt_w(keys[2 + 2 * i], n_input_ch, self.n_output_ch_green))
            g, bta = bn_params(keys[3 + 2 * i], self.n_output_ch_green)
            self.gamma_green.append(g)
            self.beta_green.append(bta)

        self._build_packed_weights()

    def _build_packed_weights(self):
        """Per-unit phase weight matrices, lane-padded to Npad=multiple of 128, plus
        the full-layer packed forms with all units folded into the matmul N axis.
        Unit u < n_classes: green conv of class u (split into the shared red-input
        block and its own green-input block).  Unit n_classes: the red conv."""
        cr = self.n_input_ch_red
        kr, kg = 4 * cr, 4 * self.n_input_ch_green
        npad = _round_up(max(self.n_output_ch_red, self.n_output_ch_green, 1), 128)

        def pad_n(a):                                   # (4, K, C) -> (4, K, Npad)
            return jnp.pad(a, ((0, 0), (0, 0), (0, npad - a.shape[-1])))

        def pad_vec(v):
            return jnp.pad(v, (0, npad - v.shape[0]))

        wr_u, wg_u, g_u, b_u = [], [], [], []
        for i in range(self.n_classes):
            w = self.w_green[i]
            wr_u.append(pad_n(_phase_weight_mats(w[:cr])))
            wg_u.append(pad_n(_phase_weight_mats(w[cr:])))
            g_u.append(pad_vec(self.gamma_green[i]))
            b_u.append(pad_vec(self.beta_green[i]))
        wr_u.append(pad_n(_phase_weight_mats(self.w_red)))      # red conv = last unit
        g_u.append(pad_vec(self.gamma_red))
        b_u.append(pad_vec(self.beta_red))

        self._kr, self._kg, self._npad = kr, kg, npad
        self._wr_units = jnp.stack(wr_u).astype(jnp.bfloat16)   # (n_units, 4, Kr, Npad)
        self._wg_units = jnp.stack(wg_u).astype(jnp.bfloat16)   # (n_green, 4, Kg, Npad)
        self._gamma_units = jnp.stack(g_u).astype(jnp.float32)  # (n_units, Npad)
        self._beta_units = jnp.stack(b_u).astype(jnp.float32)

        # full-call packed forms (units folded into N)
        self._wr_all = jnp.transpose(self._wr_units, (1, 2, 0, 3)).reshape(4, kr, -1)
        self._wg_all = jnp.transpose(self._wg_units, (1, 0, 2, 3))  # (4, n_green, Kg, Npad)

    def __call__(self, input_red, input_green, i_class=None):
        """input_red: (B, n_input_ch_red, H, W).
        input_green: list of n_classes arrays (i_class=None) or one array (i_class
        given), each (B, n_input_ch - n_input_ch_red, H, W).
        Returns (output_red, output_green) like the torch module."""
        x_red = jnp.asarray(input_red, jnp.float32)
        if i_class is None:
            greens = jnp.stack([jnp.asarray(g, jnp.float32) for g in input_green], 0)
            wr_all, wg_all = self._wr_all, self._wg_all
            ga, be = self._gamma_units, self._beta_units
        else:
            greens = jnp.asarray(input_green, jnp.float32)[None]
            sel = (i_class, self.n_classes)
            wr_sel = jnp.stack([self._wr_units[j] for j in sel], 0)
            wr_all = jnp.transpose(wr_sel, (1, 2, 0, 3)).reshape(
                4, self._kr, 2 * self._npad)
            wg_all = jnp.transpose(self._wg_units[i_class:i_class + 1], (1, 0, 2, 3))
            ga = jnp.stack([self._gamma_units[j] for j in sel], 0)
            be = jnp.stack([self._beta_units[j] for j in sel], 0)

        out_red, out_green = _star_layer_forward(
            x_red, greens, wr_all, wg_all, ga, be,
            use_bn=self.use_batch_norm, act=self.activation,
            c_red=self.n_output_ch_red, c_green=self.n_output_ch_green)
        if i_class is None:
            return out_red, list(out_green)
        return out_red, out_green[0]


# ---------------------------------------------------------------------------
# pure-XLA reference (correctness checking only)
# ---------------------------------------------------------------------------

def _reference_forward(model, input_red, input_green, i_class=None):
    """Pure-XLA reference with the same bf16 operand rounding as the kernels."""

    def bf16(x):
        return x.astype(jnp.bfloat16).astype(jnp.float32)

    def convt(x, w):
        return jax.lax.conv_general_dilated(
            bf16(x), bf16(w)[:, :, ::-1, ::-1], window_strides=(1, 1),
            padding=[(2, 2), (2, 2)], lhs_dilation=(2, 2),
            dimension_numbers=("NCHW", "IOHW", "NCHW"),
            preferred_element_type=jnp.float32)

    def bn(x, g, b):
        mean = jnp.mean(x, axis=(0, 2, 3), keepdims=True)
        var = jnp.mean(jnp.square(x - mean), axis=(0, 2, 3), keepdims=True)
        return ((x - mean) * jax.lax.rsqrt(var + 1e-5) * g[None, :, None, None]
                + b[None, :, None, None])

    def act(x):
        if model.activation == "relu":
            return jnp.maximum(x, 0.0)
        if model.activation == "leaky_relu":
            return jnp.where(x >= 0.0, x, 0.2 * x)
        if model.activation == "tanh":
            return jnp.tanh(x)
        return x

    def branch(x, w, g, b):
        y = convt(x, w)
        if model.use_batch_norm:
            y = bn(y, g, b)
        return act(y)

    out_red = branch(input_red, model.w_red, model.gamma_red, model.beta_red)
    if i_class is None:
        outs = []
        for i in range(model.n_classes):
            xin = jnp.concatenate([input_red, input_green[i]], axis=1)
            outs.append(branch(xin, model.w_green[i], model.gamma_green[i],
                               model.beta_green[i]))
        return out_red, outs
    xin = jnp.concatenate([input_red, input_green], axis=1)
    return out_red, branch(xin, model.w_green[i_class],
                           model.gamma_green[i_class],
                           model.beta_green[i_class])


# ---------------------------------------------------------------------------
# main
# ---------------------------------------------------------------------------

if __name__ == "__main__":
    B, C_IN, C_OUT, HW, N_CLASSES = 2, 8, 8, 8, 3

    root = jax.random.PRNGKey(0)
    k_model, k_red, k_green = jax.random.split(root, 3)

    model = CnvTranspose2dStarShapePallas(
        n_input_ch=C_IN, n_output_ch=C_OUT, kernel_size=4, stride=2, padding=1,
        n_classes=N_CLASSES, bias=False, red_portion_in=0.5,
        red_portion_out=0.5, use_batch_norm=True, activation="relu",
        key=k_model)

    input_red = jax.random.normal(
        k_red, (B, model.n_input_ch_red, HW, HW), jnp.float32)
    input_green = [
        jax.random.normal(jax.random.fold_in(k_green, i),
                          (B, model.n_input_ch_green, HW, HW), jnp.float32)
        for i in range(N_CLASSES)]

    # i_class=None path (all green classes + the red conv in one fused pallas_call)
    out_red, out_green = model(input_red, input_green, i_class=None)
    out_red = jax.block_until_ready(out_red)
    out_green = [jax.block_until_ready(g) for g in out_green]

    # single-class path
    out_red_1, out_green_1 = model(input_red, input_green[1], i_class=1)
    out_red_1 = jax.block_until_ready(out_red_1)
    out_green_1 = jax.block_until_ready(out_green_1)

    # ---- checks -----------------------------------------------------------
    O = 2 * HW
    assert out_red.shape == (B, model.n_output_ch_red, O, O), out_red.shape
    assert len(out_green) == N_CLASSES
    assert all(g.shape == (B, model.n_output_ch_green, O, O) for g in out_green)
    assert out_green_1.shape == (B, model.n_output_ch_green, O, O)
    assert bool(jnp.all(jnp.isfinite(out_red)))
    assert all(bool(jnp.all(jnp.isfinite(g))) for g in out_green)

    # bf16 final store -> loosened tolerance vs the f32/XLA reference
    TOL = dict(atol=2.5e-2, rtol=2.5e-2)

    ref_red, ref_green = _reference_forward(model, input_red, input_green, None)
    assert bool(jnp.allclose(out_red, ref_red, **TOL)), \
        float(jnp.max(jnp.abs(out_red - ref_red)))
    for g, rg in zip(out_green, ref_green):
        assert bool(jnp.allclose(g, rg, **TOL)), float(jnp.max(jnp.abs(g - rg)))

    ref_red_1, ref_green_1 = _reference_forward(model, input_red, input_green[1], 1)
    assert bool(jnp.allclose(out_red_1, ref_red_1, **TOL))
    assert bool(jnp.allclose(out_green_1, ref_green_1, **TOL))
    # the i_class path must also agree with the batched path (same math, bf16-rounded)
    assert bool(jnp.allclose(out_red_1, out_red, atol=2e-2))
    assert bool(jnp.allclose(out_green_1, out_green[1], atol=2e-2))

    print("KERNEL_OK")
</pallas_src>

<mosaic_0001>
module attributes {stable_mosaic.version = 11 : i64} {
  func.func @_conv_stats_kernel(%arg0: i32, %arg1: i32, %arg2: memref<1x128x16xbf16, #tpu.memory_space<vmem>>, %arg3: memref<1x16x512xbf16, #tpu.memory_space<vmem>>, %arg4: memref<1x3x128x16xbf16, #tpu.memory_space<vmem>>, %arg5: memref<1x3x16x128xbf16, #tpu.memory_space<vmem>>, %arg6: memref<1x1x2x512xf32, #tpu.memory_space<vmem>>) attributes {dimension_semantics = [#tpu.dimension_semantics<parallel>, #tpu.dimension_semantics<parallel>], iteration_bounds = array<i64: 4, 1>, scalar_prefetch = 0 : i64, scratch_operands = 0 : i64, tpu.core_type = #tpu.core_type<tc>, window_params = [{transform_indices = @transform_0, window_bounds = array<i64: 1, 128, 16>}, {transform_indices = @transform_1, window_bounds = array<i64: 1, 16, 512>}, {transform_indices = @transform_2, window_bounds = array<i64: 1, 3, 128, 16>}, {transform_indices = @transform_3, window_bounds = array<i64: 1, 3, 16, 128>}, {transform_indices = @transform_4, window_bounds = array<i64: 1, 1, 2, 512>}]} {
    %c0 = arith.constant 0 : index
    %c0_0 = arith.constant 0 : index
    %c0_1 = arith.constant 0 : index
    %0 = vector.load %arg2[%c0, %c0_0, %c0_1] : memref<1x128x16xbf16, #tpu.memory_space<vmem>>, vector<1x128x16xbf16>
    %1 = vector.shape_cast %0 : vector<1x128x16xbf16> to vector<128x16xbf16>
    %c0_2 = arith.constant 0 : index
    %c0_3 = arith.constant 0 : index
    %c0_4 = arith.constant 0 : index
    %2 = vector.load %arg3[%c0_2, %c0_3, %c0_4] : memref<1x16x512xbf16, #tpu.memory_space<vmem>>, vector<1x16x512xbf16>
    %3 = vector.shape_cast %2 : vector<1x16x512xbf16> to vector<16x512xbf16>
    %cst = arith.constant dense<0.000000e+00> : vector<128x512xf32>
    %4 = tpu.matmul %1, %3, %cst {dimension_numbers = #tpu.dot_dimension_numbers<[1], [0], [0], [1], [0, 0, 1, 1], [], []>} : vector<128x16xbf16>, vector<16x512xbf16>, vector<128x512xf32> -> vector<128x512xf32>
    %5 = vector.extract_strided_slice %4 {offsets = [0, 0], sizes = [128, 128], strides = [1, 1]} : vector<128x512xf32> to vector<128x128xf32>
    %c0_5 = arith.constant 0 : index
    %c0_6 = arith.constant 0 : index
    %c0_7 = arith.constant 0 : index
    %c0_8 = arith.constant 0 : index
    %6 = vector.load %arg4[%c0_5, %c0_6, %c0_7, %c0_8] : memref<1x3x128x16xbf16, #tpu.memory_space<vmem>>, vector<1x1x128x16xbf16>
    %7 = vector.shape_cast %6 : vector<1x1x128x16xbf16> to vector<128x16xbf16>
    %c0_9 = arith.constant 0 : index
    %c0_10 = arith.constant 0 : index
    %c0_11 = arith.constant 0 : index
    %c0_12 = arith.constant 0 : index
    %8 = vector.load %arg5[%c0_9, %c0_10, %c0_11, %c0_12] : memref<1x3x16x128xbf16, #tpu.memory_space<vmem>>, vector<1x1x16x128xbf16>
    %9 = vector.shape_cast %8 : vector<1x1x16x128xbf16> to vector<16x128xbf16>
    %cst_13 = arith.constant dense<0.000000e+00> : vector<128x128xf32>
    %10 = tpu.matmul %7, %9, %cst_13 {dimension_numbers = #tpu.dot_dimension_numbers<[1], [0], [0], [1], [0, 0, 1, 1], [], []>} : vector<128x16xbf16>, vector<16x128xbf16>, vector<128x128xf32> -> vector<128x128xf32>
    %11 = arith.addf %5, %10 : vector<128x128xf32>
    %cst_14 = arith.constant dense<0.000000e+00> : vector<128xf32>
    %12 = vector.multi_reduction <add>, %11, %cst_14 [0] : vector<128x128xf32> to vector<128xf32>
    %13 = vector.shape_cast %12 : vector<128xf32> to vector<1x128xf32>
    %14 = arith.mulf %11, %11 : vector<128x128xf32>
    %cst_15 = arith.constant dense<0.000000e+00> : vector<128xf32>
    %15 = vector.multi_reduction <add>, %14, %cst_15 [0] : vector<128x128xf32> to vector<128xf32>
    %16 = vector.shape_cast %15 : vector<128xf32> to vector<1x128xf32>
    %17 = vector.extract_strided_slice %4 {offsets = [0, 128], sizes = [128, 128], strides = [1, 1]} : vector<128x512xf32> to vector<128x128xf32>
    %c0_16 = arith.constant 0 : index
    %c1 = arith.constant 1 : index
    %c0_17 = arith.constant 0 : index
    %c0_18 = arith.constant 0 : index
    %18 = vector.load %arg4[%c0_16, %c1, %c0_17, %c0_18] : memref<1x3x128x16xbf16, #tpu.memory_space<vmem>>, vector<1x1x128x16xbf16>
    %19 = vector.shape_cast %18 : vector<1x1x128x16xbf16> to vector<128x16xbf16>
    %c0_19 = arith.constant 0 : index
    %c1_20 = arith.constant 1 : index
    %c0_21 = arith.constant 0 : index
    %c0_22 = arith.constant 0 : index
    %20 = vector.load %arg5[%c0_19, %c1_20, %c0_21, %c0_22] : memref<1x3x16x128xbf16, #tpu.memory_space<vmem>>, vector<1x1x16x128xbf16>
    %21 = vector.shape_cast %20 : vector<1x1x16x128xbf16> to vector<16x128xbf16>
    %cst_23 = arith.constant dense<0.000000e+00> : vector<128x128xf32>
    %22 = tpu.matmul %19, %21, %cst_23 {dimension_numbers = #tpu.dot_dimension_numbers<[1], [0], [0], [1], [0, 0, 1, 1], [], []>} : vector<128x16xbf16>, vector<16x128xbf16>, vector<128x128xf32> -> vector<128x128xf32>
    %23 = arith.addf %17, %22 : vector<128x128xf32>
    %cst_24 = arith.constant dense<0.000000e+00> : vector<128xf32>
    %24 = vector.multi_reduction <add>, %23, %cst_24 [0] : vector<128x128xf32> to vector<128xf32>
    %25 = vector.shape_cast %24 : vector<128xf32> to vector<1x128xf32>
    %26 = arith.mulf %23, %23 : vector<128x128xf32>
    %cst_25 = arith.constant dense<0.000000e+00> : vector<128xf32>
    %27 = vector.multi_reduction <add>, %26, %cst_25 [0] : vector<128x128xf32> to vector<128xf32>
    %28 = vector.shape_cast %27 : vector<128xf32> to vector<1x128xf32>
    %29 = vector.extract_strided_slice %4 {offsets = [0, 256], sizes = [128, 128], strides = [1, 1]} : vector<128x512xf32> to vector<128x128xf32>
    %c0_26 = arith.constant 0 : index
    %c2 = arith.constant 2 : index
    %c0_27 = arith.constant 0 : index
    %c0_28 = arith.constant 0 : index
    %30 = vector.load %arg4[%c0_26, %c2, %c0_27, %c0_28] : memref<1x3x128x16xbf16, #tpu.memory_space<vmem>>, vector<1x1x128x16xbf16>
    %31 = vector.shape_cast %30 : vector<1x1x128x16xbf16> to vector<128x16xbf16>
    %c0_29 = arith.constant 0 : index
    %c2_30 = arith.constant 2 : index
    %c0_31 = arith.constant 0 : index
    %c0_32 = arith.constant 0 : index
    %32 = vector.load %arg5[%c0_29, %c2_30, %c0_31, %c0_32] : memref<1x3x16x128xbf16, #tpu.memory_space<vmem>>, vector<1x1x16x128xbf16>
    %33 = vector.shape_cast %32 : vector<1x1x16x128xbf16> to vector<16x128xbf16>
    %cst_33 = arith.constant dense<0.000000e+00> : vector<128x128xf32>
    %34 = tpu.matmul %31, %33, %cst_33 {dimension_numbers = #tpu.dot_dimension_numbers<[1], [0], [0], [1], [0, 0, 1, 1], [], []>} : vector<128x16xbf16>, vector<16x128xbf16>, vector<128x128xf32> -> vector<128x128xf32>
    %35 = arith.addf %29, %34 : vector<128x128xf32>
    %cst_34 = arith.constant dense<0.000000e+00> : vector<128xf32>
    %36 = vector.multi_reduction <add>, %35, %cst_34 [0] : vector<128x128xf32> to vector<128xf32>
    %37 = vector.shape_cast %36 : vector<128xf32> to vector<1x128xf32>
    %38 = arith.mulf %35, %35 : vector<128x128xf32>
    %cst_35 = arith.constant dense<0.000000e+00> : vector<128xf32>
    %39 = vector.multi_reduction <add>, %38, %cst_35 [0] : vector<128x128xf32> to vector<128xf32>
    %40 = vector.shape_cast %39 : vector<128xf32> to vector<1x128xf32>
    %41 = vector.extract_strided_slice %4 {offsets = [0, 384], sizes = [128, 128], strides = [1, 1]} : vector<128x512xf32> to vector<128x128xf32>
    %cst_36 = arith.constant dense<0.000000e+00> : vector<128xf32>
    %42 = vector.multi_reduction <add>, %41, %cst_36 [0] : vector<128x128xf32> to vector<128xf32>
    %43 = vector.shape_cast %42 : vector<128xf32> to vector<1x128xf32>
    %44 = arith.mulf %41, %41 : vector<128x128xf32>
    %cst_37 = arith.constant dense<0.000000e+00> : vector<128xf32>
    %45 = vector.multi_reduction <add>, %44, %cst_37 [0] : vector<128x128xf32> to vector<128xf32>
    %46 = vector.shape_cast %45 : vector<128xf32> to vector<1x128xf32>
    %47 = tpu.concatenate %13, %25, %37, %43 in 1 : vector<1x128xf32>, vector<1x128xf32>, vector<1x128xf32>, vector<1x128xf32> -> vector<1x512xf32>
    %48 = tpu.concatenate %16, %28, %40, %46 in 1 : vector<1x128xf32>, vector<1x128xf32>, vector<1x128xf32>, vector<1x128xf32> -> vector<1x512xf32>
    %49 = tpu.concatenate %47, %48 in 0 : vector<1x512xf32>, vector<1x512xf32> -> vector<2x512xf32>
    %c0_38 = arith.constant 0 : index
    %c0_39 = arith.constant 0 : index
    %c0_40 = arith.constant 0 : index
    %c0_41 = arith.constant 0 : index
    %50 = vector.load %arg6[%c0_38, %c0_39, %c0_40, %c0_41] : memref<1x1x2x512xf32, #tpu.memory_space<vmem>>, vector<1x1x2x512xf32>
    %51 = vector.shape_cast %50 : vector<1x1x2x512xf32> to vector<2x512xf32>
    %52 = vector.shape_cast %49 : vector<2x512xf32> to vector<1x1x2x512xf32>
    tpu.vector_store %arg6[%c0_38, %c0_39, %c0_40, %c0_41], %52 {strides = array<i32>} : memref<1x1x2x512xf32, #tpu.memory_space<vmem>>, vector<1x1x2x512xf32>,
    return
  }
  func.func @transform_0(%arg0: i32, %arg1: i32) -> (i32, i32, i32) {
    %c0_i32 = arith.constant 0 : i32
    %c0_i32_0 = arith.constant 0 : i32
    return %arg0, %arg1, %c0_i32 : i32, i32, i32
  }
  func.func @transform_1(%arg0: i32, %arg1: i32) -> (i32, i32, i32) {
    %c0_i32 = arith.constant 0 : i32
    %c0_i32_0 = arith.constant 0 : i32
    %c0_i32_1 = arith.constant 0 : i32
    return %arg0, %c0_i32, %c0_i32_0 : i32, i32, i32
  }
  func.func @transform_2(%arg0: i32, %arg1: i32) -> (i32, i32, i32, i32) {
    %c0_i32 = arith.constant 0 : i32
    %c0_i32_0 = arith.constant 0 : i32
    %c0_i32_1 = arith.constant 0 : i32
    return %arg0, %c0_i32, %arg1, %c0_i32_0 : i32, i32, i32, i32
  }
  func.func @transform_3(%arg0: i32, %arg1: i32) -> (i32, i32, i32, i32) {
    %c0_i32 = arith.constant 0 : i32
    %c0_i32_0 = arith.constant 0 : i32
    %c0_i32_1 = arith.constant 0 : i32
    %c0_i32_2 = arith.constant 0 : i32
    return %arg0, %c0_i32, %c0_i32_0, %c0_i32_1 : i32, i32, i32, i32
  }
  func.func @transform_4(%arg0: i32, %arg1: i32) -> (i32, i32, i32, i32) {
    %c0_i32 = arith.constant 0 : i32
    %c0_i32_0 = arith.constant 0 : i32
    %c0_i32_1 = arith.constant 0 : i32
    return %arg0, %arg1, %c0_i32, %c0_i32_0 : i32, i32, i32, i32
  }
}

module attributes {stable_mosaic.version = 11 : i64} {
  func.func @_conv_out_kernel(%arg0: i32, %arg1: i32, %arg2: memref<1x128x16xbf16, #tpu.memory_space<vmem>>, %arg3: memref<1x16x512xbf16, #tpu.memory_space<vmem>>, %arg4: memref<1x3x128x16xbf16, #tpu.memory_space<vmem>>, %arg5: memref<1x3x16x128xbf16, #tpu.memory_space<vmem>>, %arg6: memref<1x512xf32, #tpu.memory_space<vmem>>, %arg7: memref<1x512xf32, #tpu.memory_space<vmem>>, %arg8: memref<1x128x512xbf16, #tpu.memory_space<vmem>>) attributes {dimension_semantics = [#tpu.dimension_semantics<parallel>, #tpu.dimension_semantics<parallel>], iteration_bounds = array<i64: 4, 1>, scalar_prefetch = 0 : i64, scratch_operands = 0 : i64, tpu.core_type = #tpu.core_type<tc>, window_params = [{transform_indices = @transform_0, window_bounds = array<i64: 1, 128, 16>}, {transform_indices = @transform_1, window_bounds = array<i64: 1, 16, 512>}, {transform_indices = @transform_2, window_bounds = array<i64: 1, 3, 128, 16>}, {transform_indices = @transform_3, window_bounds = array<i64: 1, 3, 16, 128>}, {pipeline_mode = #tpu.pipeline_mode<synchronous>, transform_indices = @transform_4, window_bounds = array<i64: 1, 512>}, {pipeline_mode = #tpu.pipeline_mode<synchronous>, transform_indices = @transform_5, window_bounds = array<i64: 1, 512>}, {transform_indices = @transform_6, window_bounds = array<i64: 1, 128, 512>}]} {
    %c0 = arith.constant 0 : index
    %c0_0 = arith.constant 0 : index
    %c0_1 = arith.constant 0 : index
    %0 = vector.load %arg2[%c0, %c0_0, %c0_1] : memref<1x128x16xbf16, #tpu.memory_space<vmem>>, vector<1x128x16xbf16>
    %1 = vector.shape_cast %0 : vector<1x128x16xbf16> to vector<128x16xbf16>
    %c0_2 = arith.constant 0 : index
    %c0_3 = arith.constant 0 : index
    %c0_4 = arith.constant 0 : index
    %2 = vector.load %arg3[%c0_2, %c0_3, %c0_4] : memref<1x16x512xbf16, #tpu.memory_space<vmem>>, vector<1x16x512xbf16>
    %3 = vector.shape_cast %2 : vector<1x16x512xbf16> to vector<16x512xbf16>
    %cst = arith.constant dense<0.000000e+00> : vector<128x512xf32>
    %4 = tpu.matmul %1, %3, %cst {dimension_numbers = #tpu.dot_dimension_numbers<[1], [0], [0], [1], [0, 0, 1, 1], [], []>} : vector<128x16xbf16>, vector<16x512xbf16>, vector<128x512xf32> -> vector<128x512xf32>
    %5 = vector.extract_strided_slice %4 {offsets = [0, 0], sizes = [128, 128], strides = [1, 1]} : vector<128x512xf32> to vector<128x128xf32>
    %c0_5 = arith.constant 0 : index
    %c0_6 = arith.constant 0 : index
    %c0_7 = arith.constant 0 : index
    %c0_8 = arith.constant 0 : index
    %6 = vector.load %arg4[%c0_5, %c0_6, %c0_7, %c0_8] : memref<1x3x128x16xbf16, #tpu.memory_space<vmem>>, vector<1x1x128x16xbf16>
    %7 = vector.shape_cast %6 : vector<1x1x128x16xbf16> to vector<128x16xbf16>
    %c0_9 = arith.constant 0 : index
    %c0_10 = arith.constant 0 : index
    %c0_11 = arith.constant 0 : index
    %c0_12 = arith.constant 0 : index
    %8 = vector.load %arg5[%c0_9, %c0_10, %c0_11, %c0_12] : memref<1x3x16x128xbf16, #tpu.memory_space<vmem>>, vector<1x1x16x128xbf16>
    %9 = vector.shape_cast %8 : vector<1x1x16x128xbf16> to vector<16x128xbf16>
    %cst_13 = arith.constant dense<0.000000e+00> : vector<128x128xf32>
    %10 = tpu.matmul %7, %9, %cst_13 {dimension_numbers = #tpu.dot_dimension_numbers<[1], [0], [0], [1], [0, 0, 1, 1], [], []>} : vector<128x16xbf16>, vector<16x128xbf16>, vector<128x128xf32> -> vector<128x128xf32>
    %11 = arith.addf %5, %10 : vector<128x128xf32>
    %c0_14 = arith.constant 0 : index
    %c0_15 = arith.constant 0 : index
    %12 = vector.load %arg6[%c0_14, %c0_15] : memref<1x512xf32, #tpu.memory_space<vmem>>, vector<1x128xf32>
    %13 = vector.broadcast %12 : vector<1x128xf32> to vector<128x128xf32>
    %14 = arith.mulf %11, %13 : vector<128x128xf32>
    %c0_16 = arith.constant 0 : index
    %c0_17 = arith.constant 0 : index
    %15 = vector.load %arg7[%c0_16, %c0_17] : memref<1x512xf32, #tpu.memory_space<vmem>>, vector<1x128xf32>
    %16 = vector.broadcast %15 : vector<1x128xf32> to vector<128x128xf32>
    %17 = arith.addf %14, %16 : vector<128x128xf32>
    %cst_18 = arith.constant 0.000000e+00 : f32
    %18 = vector.broadcast %cst_18 : f32 to vector<128x128xf32>
    %19 = arith.maximumf %17, %18 : vector<128x128xf32>
    %20 = vector.extract_strided_slice %4 {offsets = [0, 128], sizes = [128, 128], strides = [1, 1]} : vector<128x512xf32> to vector<128x128xf32>
    %c0_19 = arith.constant 0 : index
    %c1 = arith.constant 1 : index
    %c0_20 = arith.constant 0 : index
    %c0_21 = arith.constant 0 : index
    %21 = vector.load %arg4[%c0_19, %c1, %c0_20, %c0_21] : memref<1x3x128x16xbf16, #tpu.memory_space<vmem>>, vector<1x1x128x16xbf16>
    %22 = vector.shape_cast %21 : vector<1x1x128x16xbf16> to vector<128x16xbf16>
    %c0_22 = arith.constant 0 : index
    %c1_23 = arith.constant 1 : index
    %c0_24 = arith.constant 0 : index
    %c0_25 = arith.constant 0 : index
    %23 = vector.load %arg5[%c0_22, %c1_23, %c0_24, %c0_25] : memref<1x3x16x128xbf16, #tpu.memory_space<vmem>>, vector<1x1x16x128xbf16>
    %24 = vector.shape_cast %23 : vector<1x1x16x128xbf16> to vector<16x128xbf16>
    %cst_26 = arith.constant dense<0.000000e+00> : vector<128x128xf32>
    %25 = tpu.matmul %22, %24, %cst_26 {dimension_numbers = #tpu.dot_dimension_numbers<[1], [0], [0], [1], [0, 0, 1, 1], [], []>} : vector<128x16xbf16>, vector<16x128xbf16>, vector<128x128xf32> -> vector<128x128xf32>
    %26 = arith.addf %20, %25 : vector<128x128xf32>
    %c0_27 = arith.constant 0 : index
    %c128 = arith.constant 128 : index
    %27 = vector.load %arg6[%c0_27, %c128] : memref<1x512xf32, #tpu.memory_space<vmem>>, vector<1x128xf32>
    %28 = vector.broadcast %27 : vector<1x128xf32> to vector<128x128xf32>
    %29 = arith.mulf %26, %28 : vector<128x128xf32>
    %c0_28 = arith.constant 0 : index
    %c128_29 = arith.constant 128 : index
    %30 = vector.load %arg7[%c0_28, %c128_29] : memref<1x512xf32, #tpu.memory_space<vmem>>, vector<1x128xf32>
    %31 = vector.broadcast %30 : vector<1x128xf32> to vector<128x128xf32>
    %32 = arith.addf %29, %31 : vector<128x128xf32>
    %cst_30 = arith.constant 0.000000e+00 : f32
    %33 = vector.broadcast %cst_30 : f32 to vector<128x128xf32>
    %34 = arith.maximumf %32, %33 : vector<128x128xf32>
    %35 = vector.extract_strided_slice %4 {offsets = [0, 256], sizes = [128, 128], strides = [1, 1]} : vector<128x512xf32> to vector<128x128xf32>
    %c0_31 = arith.constant 0 : index
    %c2 = arith.constant 2 : index
    %c0_32 = arith.constant 0 : index
    %c0_33 = arith.constant 0 : index
    %36 = vector.load %arg4[%c0_31, %c2, %c0_32, %c0_33] : memref<1x3x128x16xbf16, #tpu.memory_space<vmem>>, vector<1x1x128x16xbf16>
    %37 = vector.shape_cast %36 : vector<1x1x128x16xbf16> to vector<128x16xbf16>
    %c0_34 = arith.constant 0 : index
    %c2_35 = arith.constant 2 : index
    %c0_36 = arith.constant 0 : index
    %c0_37 = arith.constant 0 : index
    %38 = vector.load %arg5[%c0_34, %c2_35, %c0_36, %c0_37] : memref<1x3x16x128xbf16, #tpu.memory_space<vmem>>, vector<1x1x16x128xbf16>
    %39 = vector.shape_cast %38 : vector<1x1x16x128xbf16> to vector<16x128xbf16>
    %cst_38 = arith.constant dense<0.000000e+00> : vector<128x128xf32>
    %40 = tpu.matmul %37, %39, %cst_38 {dimension_numbers = #tpu.dot_dimension_numbers<[1], [0], [0], [1], [0, 0, 1, 1], [], []>} : vector<128x16xbf16>, vector<16x128xbf16>, vector<128x128xf32> -> vector<128x128xf32>
    %41 = arith.addf %35, %40 : vector<128x128xf32>
    %c0_39 = arith.constant 0 : index
    %c256 = arith.constant 256 : index
    %42 = vector.load %arg6[%c0_39, %c256] : memref<1x512xf32, #tpu.memory_space<vmem>>, vector<1x128xf32>
    %43 = vector.broadcast %42 : vector<1x128xf32> to vector<128x128xf32>
    %44 = arith.mulf %41, %43 : vector<128x128xf32>
    %c0_40 = arith.constant 0 : index
    %c256_41 = arith.constant 256 : index
    %45 = vector.load %arg7[%c0_40, %c256_41] : memref<1x512xf32, #tpu.memory_space<vmem>>, vector<1x128xf32>
    %46 = vector.broadcast %45 : vector<1x128xf32> to vector<128x128xf32>
    %47 = arith.addf %44, %46 : vector<128x128xf32>
    %cst_42 = arith.constant 0.000000e+00 : f32
    %48 = vector.broadcast %cst_42 : f32 to vector<128x128xf32>
    %49 = arith.maximumf %47, %48 : vector<128x128xf32>
    %50 = vector.extract_strided_slice %4 {offsets = [0, 384], sizes = [128, 128], strides = [1, 1]} : vector<128x512xf32> to vector<128x128xf32>
    %c0_43 = arith.constant 0 : index
    %c384 = arith.constant 384 : index
    %51 = vector.load %arg6[%c0_43, %c384] : memref<1x512xf32, #tpu.memory_space<vmem>>, vector<1x128xf32>
    %52 = vector.broadcast %51 : vector<1x128xf32> to vector<128x128xf32>
    %53 = arith.mulf %50, %52 : vector<128x128xf32>
    %c0_44 = arith.constant 0 : index
    %c384_45 = arith.constant 384 : index
    %54 = vector.load %arg7[%c0_44, %c384_45] : memref<1x512xf32, #tpu.memory_space<vmem>>, vector<1x128xf32>
    %55 = vector.broadcast %54 : vector<1x128xf32> to vector<128x128xf32>
    %56 = arith.addf %53, %55 : vector<128x128xf32>
    %cst_46 = arith.constant 0.000000e+00 : f32
    %57 = vector.broadcast %cst_46 : f32 to vector<128x128xf32>
    %58 = arith.maximumf %56, %57 : vector<128x128xf32>
    %59 = tpu.concatenate %19, %34, %49, %58 in 1 : vector<128x128xf32>, vector<128x128xf32>, vector<128x128xf32>, vector<128x128xf32> -> vector<128x512xf32>
    %60 = arith.truncf %59 : vector<128x512xf32> to vector<128x512xbf16>
    %c0_47 = arith.constant 0 : index
    %c0_48 = arith.constant 0 : index
    %c0_49 = arith.constant 0 : index
    %61 = vector.load %arg8[%c0_47, %c0_48, %c0_49] : memref<1x128x512xbf16, #tpu.memory_space<vmem>>, vector<1x128x512xbf16>
    %62 = vector.shape_cast %61 : vector<1x128x512xbf16> to vector<128x512xbf16>
    %63 = vector.shape_cast %60 : vector<128x512xbf16> to vector<1x128x512xbf16>
    tpu.vector_store %arg8[%c0_47, %c0_48, %c0_49], %63 {strides = array<i32>} : memref<1x128x512xbf16, #tpu.memory_space<vmem>>, vector<1x128x512xbf16>,
    return
  }
  func.func @transform_0(%arg0: i32, %arg1: i32) -> (i32, i32, i32) {
    %c0_i32 = arith.constant 0 : i32
    %c0_i32_0 = arith.constant 0 : i32
    return %arg0, %arg1, %c0_i32 : i32, i32, i32
  }
  func.func @transform_1(%arg0: i32, %arg1: i32) -> (i32, i32, i32) {
    %c0_i32 = arith.constant 0 : i32
    %c0_i32_0 = arith.constant 0 : i32
    %c0_i32_1 = arith.constant 0 : i32
    return %arg0, %c0_i32, %c0_i32_0 : i32, i32, i32
  }
  func.func @transform_2(%arg0: i32, %arg1: i32) -> (i32, i32, i32, i32) {
    %c0_i32 = arith.constant 0 : i32
    %c0_i32_0 = arith.constant 0 : i32
    %c0_i32_1 = arith.constant 0 : i32
    return %arg0, %c0_i32, %arg1, %c0_i32_0 : i32, i32, i32, i32
  }
  func.func @transform_3(%arg0: i32, %arg1: i32) -> (i32, i32, i32, i32) {
    %c0_i32 = arith.constant 0 : i32
    %c0_i32_0 = arith.constant 0 : i32
    %c0_i32_1 = arith.constant 0 : i32
    %c0_i32_2 = arith.constant 0 : i32
    return %arg0, %c0_i32, %c0_i32_0, %c0_i32_1 : i32, i32, i32, i32
  }
  func.func @transform_4(%arg0: i32, %arg1: i32) -> (i32, i32) {
    %c0_i32 = arith.constant 0 : i32
    %c0_i32_0 = arith.constant 0 : i32
    %c0_i32_1 = arith.constant 0 : i32
    return %c0_i32, %c0_i32_0 : i32, i32
  }
  func.func @transform_5(%arg0: i32, %arg1: i32) -> (i32, i32) {
    %c0_i32 = arith.constant 0 : i32
    %c0_i32_0 = arith.constant 0 : i32
    %c0_i32_1 = arith.constant 0 : i32
    return %c0_i32, %c0_i32_0 : i32, i32
  }
  func.func @transform_6(%arg0: i32, %arg1: i32) -> (i32, i32, i32) {
    %c0_i32 = arith.constant 0 : i32
    %c0_i32_0 = arith.constant 0 : i32
    return %arg0, %arg1, %c0_i32 : i32, i32, i32
  }
}

</mosaic_0001>

<llo_original>
// kernel: _star_layer_forward.2
$region0: #{_star_layer_forward.2}
  #allocation0 [shape = 'u32[]', space=smem, size = 0x4, offset = 0x4, fixed_abs, tag = 'smem constant byte address 0x4 - core index']
  #allocation1 [shape = 'u32[72,128]{1,0:T(1,128)}', space=vmem, size = 0x9000, scoped, tag = 'internal scratch']
  %s0 = inlined_call_operand.vmem [shape: bf16[4,128,16], index: 0, kind: input, shape index: {}]
  %s1 = inlined_call_operand.vmem [shape: bf16[4,16,512], index: 1, kind: input, shape index: {}]
  %s2 = inlined_call_operand.vmem [shape: bf16[4,3,128,16], index: 2, kind: input, shape index: {}]
  %s3 = inlined_call_operand.vmem [shape: bf16[4,3,16,128], index: 3, kind: input, shape index: {}]
  %s4 = inlined_call_operand.vmem [shape: f32[4,1,2,512], index: 4, kind: output, shape index: {}]
  %s5 = sld [smem:[#allocation0]]
  $region49: #{_star_layer_forward.2} parent=0
    _
  %s7 = ssub.s32 1, %s5
  %s8 = scalar_select 0, %s7, %s5
  loop: start=0, step=1, limit=6
  $region2: #{_star_layer_forward.2} parent=0 // loop_pre_header
    _
  $region3: #{_star_layer_forward.2} parent=0 // loop_header
    %s10 = sphi 0, %s14
    %p11 = scmp.ge.s32.totalorder %s10, 6
    %s17 = sphi 0, %s29
    %s18 = sphi 0, %s25
    %s19 = sphi 0, %s17
    %s20 = sphi 0, %s18
    %s21 = sphi 0, %s19
    %s22 = sphi 0, %s20
    %s34 = sphi 0, %s36
    %s37 = sphi 0, %s34
    %s38 = sphi 0, %s37
    %s54 = sphi 0, %s38
    %s60 = sphi 0, %s62
    %s63 = sphi 0, %s60
    %s64 = sphi 0, %s63
    %s80 = sphi 0, %s64
    %s88 = sphi 0, %s90
    %s91 = sphi 0, %s88
    %s92 = sphi 0, %s91
    %s108 = sphi 0, %s92
    %s114 = sphi 0, %s116
    %s117 = sphi 0, %s114
    %s118 = sphi 0, %s117
    %s134 = sphi 0, %s118
    %s142 = sphi 0, %s144
    %s145 = sphi 0, %s142
    %s146 = sphi 0, %s145
    %s162 = sphi 0, %s146
  $region4: #{_star_layer_forward.2} parent=0 // loop_header_branch
    %13 = sbr.rel (%p11) target = $region8
  $region5: #{_star_layer_forward.2} parent=0 // loop_body
    %s15 = ssub.s32 %s10, 1
    %s16 = ssub.s32 %s10, 2
    %s23 = sadd.s32 1, %s18
    %p24 = scmp.ge.s32.totalorder %s23, 1
    %s25 = scalar_select %p24, 0, %s23
    %s26 = sadd.s32 1, %s17
    %s27 = scalar_select %p24, %s26, %s17
    %p28 = scmp.ge.s32.totalorder %s27, 4
    %s29 = scalar_select %p28, 0, %s27
    %s30 = ssub.s32 %s17, %s29
    %s31 = ssub.s32 %s18, %s25
    %s32 = sor.u32 %s30, %s31
    %p33 = scmp.eq.s32.totalorder %s32, 0
    %s35 = sadd.s32 %s34, 1
    %s36 = scalar_select %p33, %s34, %s35
    %p39 = pneg %p33
    %p40 = scmp.eq.s32.totalorder %s10, 3
    %p41 = por %p39, %p40
    %p42 = scmp.ne.s32.totalorder %s34, %s37
    %p43 = scmp.eq.s32.totalorder %s10, 0
    %p44 = por %p42, %p43
    %p45 = scmp.ne.s32.totalorder %s34, %s37
    %p46 = scmp.eq.s32.totalorder %s15, 3
    %p47 = por %p45, %p46
    %p48 = scmp.ne.s32.totalorder %s37, %s38
    %p49 = scmp.eq.s32.totalorder %s15, 0
    %p50 = por %p48, %p49
    %p51 = scmp.ne.s32.totalorder %s37, %s38
    %p52 = scmp.eq.s32.totalorder %s16, 3
    %p53 = por %p51, %p52
    %p55 = scmp.ne.s32.totalorder %s38, %s54
    %p56 = scmp.eq.s32.totalorder %s16, 0
    %p57 = por %p55, %p56
    %s58 = ssub.s32 %s17, %s29
    %p59 = scmp.eq.s32.totalorder %s58, 0
    %s61 = sadd.s32 %s60, 1
    %s62 = scalar_select %p59, %s60, %s61
    %p65 = pneg %p59
    %p66 = scmp.eq.s32.totalorder %s10, 3
    %p67 = por %p65, %p66
    %p68 = scmp.ne.s32.totalorder %s60, %s63
    %p69 = scmp.eq.s32.totalorder %s10, 0
    %p70 = por %p68, %p69
    %p71 = scmp.ne.s32.totalorder %s60, %s63
    %p72 = scmp.eq.s32.totalorder %s15, 3
    %p73 = por %p71, %p72
    %p74 = scmp.ne.s32.totalorder %s63, %s64
    %p75 = scmp.eq.s32.totalorder %s15, 0
    %p76 = por %p74, %p75
    %p77 = scmp.ne.s32.totalorder %s63, %s64
    %p78 = scmp.eq.s32.totalorder %s16, 3
    %p79 = por %p77, %p78
    %p81 = scmp.ne.s32.totalorder %s64, %s80
    %p82 = scmp.eq.s32.totalorder %s16, 0
    %p83 = por %p81, %p82
    %s84 = ssub.s32 %s17, %s29
    %s85 = ssub.s32 %s18, %s25
    %s86 = sor.u32 %s84, %s85
    %p87 = scmp.eq.s32.totalorder %s86, 0
    %s89 = sadd.s32 %s88, 1
    %s90 = scalar_select %p87, %s88, %s89
    %p93 = pneg %p87
    %p94 = scmp.eq.s32.totalorder %s10, 3
    %p95 = por %p93, %p94
    %p96 = scmp.ne.s32.totalorder %s88, %s91
    %p97 = scmp.eq.s32.totalorder %s10, 0
    %p98 = por %p96, %p97
    %p99 = scmp.ne.s32.totalorder %s88, %s91
    %p100 = scmp.eq.s32.totalorder %s15, 3
    %p101 = por %p99, %p100
    %p102 = scmp.ne.s32.totalorder %s91, %s92
    %p103 = scmp.eq.s32.totalorder %s15, 0
    %p104 = por %p102, %p103
    %p105 = scmp.ne.s32.totalorder %s91, %s92
    %p106 = scmp.eq.s32.totalorder %s16, 3
    %p107 = por %p105, %p106
    %p109 = scmp.ne.s32.totalorder %s92, %s108
    %p110 = scmp.eq.s32.totalorder %s16, 0
    %p111 = por %p109, %p110
    %s112 = ssub.s32 %s17, %s29
    %p113 = scmp.eq.s32.totalorder %s112, 0
    %s115 = sadd.s32 %s114, 1
    %s116 = scalar_select %p113, %s114, %s115
    %p119 = pneg %p113
    %p120 = scmp.eq.s32.totalorder %s10, 3
    %p121 = por %p119, %p120
    %p122 = scmp.ne.s32.totalorder %s114, %s117
    %p123 = scmp.eq.s32.totalorder %s10, 0
    %p124 = por %p122, %p123
    %p125 = scmp.ne.s32.totalorder %s114, %s117
    %p126 = scmp.eq.s32.totalorder %s15, 3
    %p127 = por %p125, %p126
    %p128 = scmp.ne.s32.totalorder %s117, %s118
    %p129 = scmp.eq.s32.totalorder %s15, 0
    %p130 = por %p128, %p129
    %p131 = scmp.ne.s32.totalorder %s117, %s118
    %p132 = scmp.eq.s32.totalorder %s16, 3
    %p133 = por %p131, %p132
    %p135 = scmp.ne.s32.totalorder %s118, %s134
    %p136 = scmp.eq.s32.totalorder %s16, 0
    %p137 = por %p135, %p136
    %s138 = ssub.s32 %s17, %s29
    %s139 = ssub.s32 %s18, %s25
    %s140 = sor.u32 %s138, %s139
    %p141 = scmp.eq.s32.totalorder %s140, 0
    %s143 = sadd.s32 %s142, 1
    %s144 = scalar_select %p141, %s142, %s143
    %p147 = pneg %p141
    %p148 = scmp.eq.s32.totalorder %s10, 3
    %p149 = por %p147, %p148
    %p150 = scmp.ne.s32.totalorder %s142, %s145
    %p151 = scmp.eq.s32.totalorder %s10, 0
    %p152 = por %p150, %p151
    %p153 = scmp.ne.s32.totalorder %s142, %s145
    %p154 = scmp.eq.s32.totalorder %s15, 3
    %p155 = por %p153, %p154
    %p156 = scmp.ne.s32.totalorder %s145, %s146
    %p157 = scmp.eq.s32.totalorder %s15, 0
    %p158 = por %p156, %p157
    %p159 = scmp.ne.s32.totalorder %s145, %s146
    %p160 = scmp.eq.s32.totalorder %s16, 3
    %p161 = por %p159, %p160
    %p163 = scmp.ne.s32.totalorder %s146, %s162
    %p164 = scmp.eq.s32.totalorder %s16, 0
    %p165 = por %p163, %p164
    %p166 = scmp.le.s32.totalorder 1, %s10
    %p167 = scmp.lt.s32.totalorder %s10, 5
    %p168 = pnand %p166, %p167
    %p169 = pneg %p168
    // Predicated region
    $region9: #{_star_layer_forward.2} parent=5 // pred_check
      _
    $region10: #{_star_layer_forward.2} parent=5 // pred_check_branch
      %171 = sbr.rel (%p168) target = $region12
    $region11: #{_star_layer_forward.2} parent=5 // pred_region
      %s172 = ssub.s32 %s10, 1
    $region12: #{_star_layer_forward.2} parent=5 // pred_fallthru
      _
    %p173 = scmp.lt.s32.totalorder %s10, 4
    // Predicated region
    $region13: #{_star_layer_forward.2} parent=5 // pred_check
      %p174 = pneg %p173
    $region14: #{_star_layer_forward.2} parent=5 // pred_check_branch
      %176 = sbr.rel (%p174) target = $region16
    $region15: #{_star_layer_forward.2} parent=5 // pred_region
      // Predicated region
      $region17: #{_star_layer_forward.2} parent=15 // pred_check
        %p177 = pneg %p44
      $region18: #{_star_layer_forward.2} parent=15 // pred_check_branch
        %179 = sbr.rel (%p177) target = $region20
      $region19: #{_star_layer_forward.2} parent=15 // pred_region
        %s180 = smul.u32 16, %s18
        %p181 = scmp.lt.s32.totalorder %s17, 3
        %s182 = scalar_select %p181, %s17, 3
        %p183 = scmp.lt.s32.totalorder %s180, 15
        %s184 = scalar_select %p183, %s180, 15
        %s185 = smul.addr %s182, 16
        %s186 = sadd.s32 %s184, %s185
        %s187 = smul.addr %s186, 4
        %s188 = scalar_lea.vmem %s0, %s187
        %s189 = smul.u32 16, %s18
      $region20: #{_star_layer_forward.2} parent=15 // pred_fallthru
        _
      // Predicated region
      $region21: #{_star_layer_forward.2} parent=15 // pred_check
        %p190 = pneg %p70
      $region22: #{_star_layer_forward.2} parent=15 // pred_check_branch
        %192 = sbr.rel (%p190) target = $region24
      $region23: #{_star_layer_forward.2} parent=15 // pred_region
        %p193 = scmp.lt.s32.totalorder %s17, 3
        %s194 = scalar_select %p193, %s17, 3
        %s195 = smul.addr %s194, 8
        %s196 = smul.addr %s195, 4
        %s197 = scalar_lea.vmem %s1, %s196
      $region24: #{_star_layer_forward.2} parent=15 // pred_fallthru
        _
      // Predicated region
      $region25: #{_star_layer_forward.2} parent=15 // pred_check
        %p198 = pneg %p98
      $region26: #{_star_layer_forward.2} parent=15 // pred_check_branch
        %200 = sbr.rel (%p198) target = $region28
      $region27: #{_star_layer_forward.2} parent=15 // pred_region
        %s201 = smul.u32 16, %s18
        %p202 = scmp.lt.s32.totalorder %s17, 3
        %s203 = scalar_select %p202, %s17, 3
        %p204 = scmp.lt.s32.totalorder %s201, 15
        %s205 = scalar_select %p204, %s201, 15
        %s206 = smul.addr %s203, 48
        %s207 = sadd.s32 %s205, %s206
        %s208 = smul.addr %s207, 4
        %s209 = scalar_lea.vmem %s2, %s208
        %s210 = smul.u32 16, %s18
      $region28: #{_star_layer_forward.2} parent=15 // pred_fallthru
        _
      // Predicated region
      $region29: #{_star_layer_forward.2} parent=15 // pred_check
        %p211 = pneg %p124
      $region30: #{_star_layer_forward.2} parent=15 // pred_check_branch
        %213 = sbr.rel (%p211) target = $region32
      $region31: #{_star_layer_forward.2} parent=15 // pred_region
        %p214 = scmp.lt.s32.totalorder %s17, 3
        %s215 = scalar_select %p214, %s17, 3
        %s216 = smul.addr %s215, 6
        %s217 = smul.addr %s216, 4
        %s218 = scalar_lea.vmem %s3, %s217
      $region32: #{_star_layer_forward.2} parent=15 // pred_fallthru
        _
    $region16: #{_star_layer_forward.2} parent=5 // pred_fallthru
      _
    %p219 = scmp.le.s32.totalorder 1, %s10
    %p220 = scmp.lt.s32.totalorder %s10, 5
    %p221 = pnand %p219, %p220
    %p222 = pneg %p221
    // Predicated region
    $region33: #{_star_layer_forward.2} parent=5 // pred_check
      _
    $region34: #{_star_layer_forward.2} parent=5 // pred_check_branch
      %224 = sbr.rel (%p221) target = $region36
    $region35: #{_star_layer_forward.2} parent=5 // pred_region
      %s225 = ssub.s32 %s10, 1
      %s226 = smul.u32 16, %s20
      %p227 = scmp.lt.s32.totalorder %s19, 3
      %s228 = scalar_select %p227, %s19, 3
      %p229 = scmp.lt.s32.totalorder %s226, 15
      %s230 = scalar_select %p229, %s226, 15
      %s231 = smul.addr %s228, 16
      %s232 = sadd.s32 %s230, %s231
      %s233 = smul.addr %s232, 4
      %s234 = scalar_lea.vmem %s0, %s233
      %p235 = pneg %p50
      %p236 = pneg %p47
      %p237 = scmp.lt.s32.totalorder %s19, 3
      %s238 = scalar_select %p237, %s19, 3
      %s239 = smul.addr %s238, 8
      %s240 = smul.addr %s239, 4
      %s241 = scalar_lea.vmem %s1, %s240
      %p242 = pneg %p76
      %p243 = pneg %p73
      %s244 = smul.u32 16, %s20
      %p245 = scmp.lt.s32.totalorder %s19, 3
      %s246 = scalar_select %p245, %s19, 3
      %p247 = scmp.lt.s32.totalorder %s244, 15
      %s248 = scalar_select %p247, %s244, 15
      %s249 = smul.addr %s246, 48
      %s250 = sadd.s32 %s248, %s249
      %s251 = smul.addr %s250, 4
      %s252 = scalar_lea.vmem %s2, %s251
      %p253 = pneg %p104
      %p254 = pneg %p101
      %p255 = scmp.lt.s32.totalorder %s19, 3
      %s256 = scalar_select %p255, %s19, 3
      %s257 = smul.addr %s256, 6
      %s258 = smul.addr %s257, 4
      %s259 = scalar_lea.vmem %s3, %s258
      %p260 = pneg %p130
      %p261 = pneg %p127
      %p262 = pneg %p158
      %p263 = pneg %p155
      %p264 = scmp.lt.s32.totalorder %s19, 3
      %s265 = scalar_select %p264, %s19, 3
      %p266 = scmp.lt.s32.totalorder %s20, 0
      %s267 = scalar_select %p266, %s20, 0
      %s268 = smul.addr %s267, 4
      %s269 = smul.addr %s265, 4
      %s270 = sadd.s32 %s268, %s269
      %s271 = smul.addr %s270, 2
      %s272 = scalar_lea.vmem %s4, %s271
      %s273 = smul.u32 16, %s20
      %p274 = scmp.lt.s32.totalorder %s19, 3
      %s275 = scalar_select %p274, %s19, 3
      %p276 = scmp.lt.s32.totalorder %s273, 15
      %s277 = scalar_select %p276, %s273, 15
      %s278 = smul.addr %s275, 16
      %s279 = sadd.s32 %s277, %s278
      %s280 = smul.addr %s279, 4
      %s281 = scalar_lea.vmem %s0, %s280
      %s282 = smul.u32 16, %s20
      %p283 = scmp.lt.s32.totalorder %s19, 3
      %s284 = scalar_select %p283, %s19, 3
      %s285 = smul.addr %s284, 8
      %s286 = smul.addr %s285, 4
      %s287 = scalar_lea.vmem %s1, %s286
      %s288 = smul.u32 16, %s20
      %p289 = scmp.lt.s32.totalorder %s19, 3
      %s290 = scalar_select %p289, %s19, 3
      %p291 = scmp.lt.s32.totalorder %s288, 15
      %s292 = scalar_select %p291, %s288, 15
      %s293 = smul.addr %s290, 48
      %s294 = sadd.s32 %s292, %s293
      %s295 = smul.addr %s294, 4
      %s296 = scalar_lea.vmem %s2, %s295
      %s297 = smul.u32 16, %s20
      %p298 = scmp.lt.s32.totalorder %s19, 3
      %s299 = scalar_select %p298, %s19, 3
      %s300 = smul.addr %s299, 6
      %s301 = smul.addr %s300, 4
      %s302 = scalar_lea.vmem %s3, %s301
      %p303 = scmp.lt.s32.totalorder %s19, 3
      %s304 = scalar_select %p303, %s19, 3
      %p305 = scmp.lt.s32.totalorder %s20, 0
      %s306 = scalar_select %p305, %s20, 0
      %s307 = smul.addr %s306, 4
      %s308 = smul.addr %s304, 4
      %s309 = sadd.s32 %s307, %s308
      %s310 = smul.addr %s309, 2
      %s311 = scalar_lea.vmem %s4, %s310
      %v313 = vld [vmem:[%s281] sm:$0xf]
      %v314 = vld [vmem:[%s281 + $0x4] sm:$0xf]
      %v315 = vld [vmem:[%s281 + $0x8] sm:$0xf]
      %v316 = vld [vmem:[%s281 + $0xc] sm:$0xf]
      %v317 = vld [vmem:[%s281 + $0x10] sm:$0xf]
      %v318 = vld [vmem:[%s281 + $0x14] sm:$0xf]
      %v319 = vld [vmem:[%s281 + $0x18] sm:$0xf]
      %v320 = vld [vmem:[%s281 + $0x1c] sm:$0xf]
      %v321 = vld [vmem:[%s281 + $0x20] sm:$0xf]
      %v322 = vld [vmem:[%s281 + $0x24] sm:$0xf]
      %v323 = vld [vmem:[%s281 + $0x28] sm:$0xf]
      %v324 = vld [vmem:[%s281 + $0x2c] sm:$0xf]
      %v325 = vld [vmem:[%s281 + $0x30] sm:$0xf]
      %v326 = vld [vmem:[%s281 + $0x34] sm:$0xf]
      %v327 = vld [vmem:[%s281 + $0x38] sm:$0xf]
      %v328 = vld [vmem:[%s281 + $0x3c] sm:$0xf]
      %v329 = vld [vmem:[%s287] sm:$0xff]
      %v330 = vld [vmem:[%s287 + $0x8] sm:$0xff]
      %v331 = vld [vmem:[%s287 + $0x10] sm:$0xff]
      %v332 = vld [vmem:[%s287 + $0x18] sm:$0xff]
      %v349 = vunpack.c.l.b16 %v313
      %v350 = vunpack.c.l.b16 %v314
      %v351 = vunpack.c.l.b16 %v315
      %v352 = vunpack.c.l.b16 %v316
      %v353 = vunpack.c.l.b16 %v317
      %v354 = vunpack.c.l.b16 %v318
      %v355 = vunpack.c.l.b16 %v319
      %v356 = vunpack.c.l.b16 %v320
      %v357 = vunpack.c.l.b16 %v321
      %v358 = vunpack.c.l.b16 %v322
      %v359 = vunpack.c.l.b16 %v323
      %v360 = vunpack.c.l.b16 %v324
      %v361 = vunpack.c.l.b16 %v325
      %v362 = vunpack.c.l.b16 %v326
      %v363 = vunpack.c.l.b16 %v327
      %v364 = vunpack.c.l.b16 %v328
      %v365 = vpack.c.b16 %v350, %v349
      %v366 = vpack.c.b16 %v352, %v351
      %v367 = vpack.c.b16 %v354, %v353
      %v368 = vpack.c.b16 %v356, %v355
      %v369 = vpack.c.b16 %v358, %v357
      %v370 = vpack.c.b16 %v360, %v359
      %v371 = vpack.c.b16 %v362, %v361
      %v372 = vpack.c.b16 %v364, %v363
      %v377 = vunpack.c.l.b16 %v329
      %v378 = vunpack.c.h.b16 %v329
      %v379 = vunpack.c.l.b16 %v330
      %v380 = vunpack.c.h.b16 %v330
      %v381 = vunpack.c.l.b16 %v331
      %v382 = vunpack.c.h.b16 %v331
      %v383 = vunpack.c.l.b16 %v332
      %v384 = vunpack.c.h.b16 %v332
      %v385 = vpack.c.b16 %v381, %v377
      %v386 = vpack.c.b16 %v382, %v378
      %v387 = vpack.c.b16 %v383, %v379
      %v388 = vpack.c.b16 %v384, %v380
      %vm393 = vcmask 130048
      %v395 = vsel %vm393, %v365, 0
      %v398 = vsel %vm393, %v366, 0
      %v401 = vsel %vm393, %v367, 0
      %v404 = vsel %vm393, %v368, 0
      %v407 = vsel %vm393, %v369, 0
      %v410 = vsel %vm393, %v370, 0
      %v413 = vsel %vm393, %v371, 0
      %v416 = vsel %vm393, %v372, 0
      %418 = vmatpush.bf16.msra.mxu0 0
      %419 = vmatpush.bf16.msra.mxu0 0
      %420 = vmatpush.bf16.msra.mxu0 0
      %421 = vmatpush.bf16.msra.mxu0 0
      %422 = vmatpush.bf16.msra.mxu0 0
      %423 = vmatpush.bf16.msra.mxu0 0
      %424 = vmatpush.bf16.msra.mxu0 0
      %425 = vmatpush.bf16.msra.mxu0 %v385
      %426 = vmatmul.bf16.gmra.mxu0 %v395
      %v427 = vpop.f32.mrf.mxu0
      %v428 = vadd.f32 0.0, %v427
      %v429 = vpop.f32.mrf.mxu0
      %v430 = vadd.f32 0.0, %v429
      %431 = vmatmul.bf16.gmra.mxu0 %v398
      %v432 = vpop.f32.mrf.mxu0
      %v433 = vadd.f32 0.0, %v432
      %v434 = vpop.f32.mrf.mxu0
      %v435 = vadd.f32 0.0, %v434
      %436 = vmatmul.bf16.gmra.mxu0 %v401
      %v437 = vpop.f32.mrf.mxu0
      %v438 = vadd.f32 0.0, %v437
      %v439 = vpop.f32.mrf.mxu0
      %v440 = vadd.f32 0.0, %v439
      %441 = vmatmul.bf16.gmra.mxu0 %v404
      %v442 = vpop.f32.mrf.mxu0
      %v443 = vadd.f32 0.0, %v442
      %v444 = vpop.f32.mrf.mxu0
      %v445 = vadd.f32 0.0, %v444
      %446 = vmatmul.bf16.gmra.mxu0 %v407
      %v447 = vpop.f32.mrf.mxu0
      %v448 = vadd.f32 0.0, %v447
      %v449 = vpop.f32.mrf.mxu0
      %v450 = vadd.f32 0.0, %v449
      %451 = vmatmul.bf16.gmra.mxu0 %v410
      %v452 = vpop.f32.mrf.mxu0
      %v453 = vadd.f32 0.0, %v452
      %v454 = vpop.f32.mrf.mxu0
      %v455 = vadd.f32 0.0, %v454
      %456 = vmatmul.bf16.gmra.mxu0 %v413
      %v457 = vpop.f32.mrf.mxu0
      %v458 = vadd.f32 0.0, %v457
      %v459 = vpop.f32.mrf.mxu0
      %v460 = vadd.f32 0.0, %v459
      %461 = vmatmul.bf16.gmra.mxu0 %v416
      %v462 = vpop.f32.mrf.mxu0
      %v463 = vadd.f32 0.0, %v462
      %v464 = vpop.f32.mrf.mxu0
      %v465 = vadd.f32 0.0, %v464
      %466 = vdwg.mxu0
      %467 = vmatpush.bf16.msra.mxu0 0
      %468 = vmatpush.bf16.msra.mxu0 0
      %469 = vmatpush.bf16.msra.mxu0 0
      %470 = vmatpush.bf16.msra.mxu0 0
      %471 = vmatpush.bf16.msra.mxu0 0
      %472 = vmatpush.bf16.msra.mxu0 0
      %473 = vmatpush.bf16.msra.mxu0 0
      %474 = vmatpush.bf16.msra.mxu0 %v386
      %475 = vmatmul.bf16.gmra.mxu0 %v395
      %v476 = vpop.f32.mrf.mxu0
      %v477 = vadd.f32 0.0, %v476
      %v478 = vpop.f32.mrf.mxu0
      %v479 = vadd.f32 0.0, %v478
      %480 = vmatmul.bf16.gmra.mxu0 %v398
      %v481 = vpop.f32.mrf.mxu0
      %v482 = vadd.f32 0.0, %v481
      %v483 = vpop.f32.mrf.mxu0
      %v484 = vadd.f32 0.0, %v483
      %485 = vmatmul.bf16.gmra.mxu0 %v401
      %v486 = vpop.f32.mrf.mxu0
      %v487 = vadd.f32 0.0, %v486
      %v488 = vpop.f32.mrf.mxu0
      %v489 = vadd.f32 0.0, %v488
      %490 = vmatmul.bf16.gmra.mxu0 %v404
      %v491 = vpop.f32.mrf.mxu0
      %v492 = vadd.f32 0.0, %v491
      %v493 = vpop.f32.mrf.mxu0
      %v494 = vadd.f32 0.0, %v493
      %495 = vmatmul.bf16.gmra.mxu0 %v407
      %v496 = vpop.f32.mrf.mxu0
      %v497 = vadd.f32 0.0, %v496
      %v498 = vpop.f32.mrf.mxu0
      %v499 = vadd.f32 0.0, %v498
      %500 = vmatmul.bf16.gmra.mxu0 %v410
      %v501 = vpop.f32.mrf.mxu0
      %v502 = vadd.f32 0.0, %v501
      %v503 = vpop.f32.mrf.mxu0
      %v504 = vadd.f32 0.0, %v503
      %505 = vmatmul.bf16.gmra.mxu0 %v413
      %v506 = vpop.f32.mrf.mxu0
      %v507 = vadd.f32 0.0, %v506
      %v508 = vpop.f32.mrf.mxu0
      %v509 = vadd.f32 0.0, %v508
      %510 = vmatmul.bf16.gmra.mxu0 %v416
      %v511 = vpop.f32.mrf.mxu0
      %v512 = vadd.f32 0.0, %v511
      %v513 = vpop.f32.mrf.mxu0
      %v514 = vadd.f32 0.0, %v513
      %515 = vdwg.mxu0
      %516 = vmatpush.bf16.msra.mxu0 0
      %517 = vmatpush.bf16.msra.mxu0 0
      %518 = vmatpush.bf16.msra.mxu0 0
      %519 = vmatpush.bf16.msra.mxu0 0
      %520 = vmatpush.bf16.msra.mxu0 0
      %521 = vmatpush.bf16.msra.mxu0 0
      %522 = vmatpush.bf16.msra.mxu0 0
      %523 = vmatpush.bf16.msra.mxu0 %v387
      %524 = vmatmul.bf16.gmra.mxu0 %v395
      %v525 = vpop.f32.mrf.mxu0
      %v526 = vadd.f32 0.0, %v525
      %v527 = vpop.f32.mrf.mxu0
      %v528 = vadd.f32 0.0, %v527
      %529 = vmatmul.bf16.gmra.mxu0 %v398
      %v530 = vpop.f32.mrf.mxu0
      %v531 = vadd.f32 0.0, %v530
      %v532 = vpop.f32.mrf.mxu0
      %v533 = vadd.f32 0.0, %v532
      %534 = vmatmul.bf16.gmra.mxu0 %v401
      %v535 = vpop.f32.mrf.mxu0
      %v536 = vadd.f32 0.0, %v535
      %v537 = vpop.f32.mrf.mxu0
      %v538 = vadd.f32 0.0, %v537
      %539 = vmatmul.bf16.gmra.mxu0 %v404
      %v540 = vpop.f32.mrf.mxu0
      %v541 = vadd.f32 0.0, %v540
      %v542 = vpop.f32.mrf.mxu0
      %v543 = vadd.f32 0.0, %v542
      %544 = vmatmul.bf16.gmra.mxu0 %v407
      %v545 = vpop.f32.mrf.mxu0
      %v546 = vadd.f32 0.0, %v545
      %v547 = vpop.f32.mrf.mxu0
      %v548 = vadd.f32 0.0, %v547
      %549 = vmatmul.bf16.gmra.mxu0 %v410
      %v550 = vpop.f32.mrf.mxu0
      %v551 = vadd.f32 0.0, %v550
      %v552 = vpop.f32.mrf.mxu0
      %v553 = vadd.f32 0.0, %v552
      %554 = vmatmul.bf16.gmra.mxu0 %v413
      %v555 = vpop.f32.mrf.mxu0
      %v556 = vadd.f32 0.0, %v555
      %v557 = vpop.f32.mrf.mxu0
      %v558 = vadd.f32 0.0, %v557
      %559 = vmatmul.bf16.gmra.mxu0 %v416
      %v560 = vpop.f32.mrf.mxu0
      %v561 = vadd.f32 0.0, %v560
      %v562 = vpop.f32.mrf.mxu0
      %v563 = vadd.f32 0.0, %v562
      %564 = vdwg.mxu0
      %565 = vmatpush.bf16.msra.mxu0 0
      %566 = vmatpush.bf16.msra.mxu0 0
      %567 = vmatpush.bf16.msra.mxu0 0
      %568 = vmatpush.bf16.msra.mxu0 0
      %569 = vmatpush.bf16.msra.mxu0 0
      %570 = vmatpush.bf16.msra.mxu0 0
      %571 = vmatpush.bf16.msra.mxu0 0
      %572 = vmatpush.bf16.msra.mxu0 %v388
      %573 = vmatmul.bf16.gmra.mxu0 %v395
      %v574 = vpop.f32.mrf.mxu0
      %v575 = vadd.f32 0.0, %v574
      %v576 = vpop.f32.mrf.mxu0
      %v577 = vadd.f32 0.0, %v576
      %578 = vmatmul.bf16.gmra.mxu0 %v398
      %v579 = vpop.f32.mrf.mxu0
      %v580 = vadd.f32 0.0, %v579
      %v581 = vpop.f32.mrf.mxu0
      %v582 = vadd.f32 0.0, %v581
      %583 = vmatmul.bf16.gmra.mxu0 %v401
      %v584 = vpop.f32.mrf.mxu0
      %v585 = vadd.f32 0.0, %v584
      %v586 = vpop.f32.mrf.mxu0
      %v587 = vadd.f32 0.0, %v586
      %588 = vmatmul.bf16.gmra.mxu0 %v404
      %v589 = vpop.f32.mrf.mxu0
      %v590 = vadd.f32 0.0, %v589
      %v591 = vpop.f32.mrf.mxu0
      %v592 = vadd.f32 0.0, %v591
      %593 = vmatmul.bf16.gmra.mxu0 %v407
      %v594 = vpop.f32.mrf.mxu0
      %v595 = vadd.f32 0.0, %v594
      %v596 = vpop.f32.mrf.mxu0
      %v597 = vadd.f32 0.0, %v596
      %598 = vmatmul.bf16.gmra.mxu0 %v410
      %v599 = vpop.f32.mrf.mxu0
      %v600 = vadd.f32 0.0, %v599
      %v601 = vpop.f32.mrf.mxu0
      %v602 = vadd.f32 0.0, %v601
      %603 = vmatmul.bf16.gmra.mxu0 %v413
      %v604 = vpop.f32.mrf.mxu0
      %v605 = vadd.f32 0.0, %v604
      %v606 = vpop.f32.mrf.mxu0
      %v607 = vadd.f32 0.0, %v606
      %608 = vmatmul.bf16.gmra.mxu0 %v416
      %v609 = vpop.f32.mrf.mxu0
      %v610 = vadd.f32 0.0, %v609
      %v611 = vpop.f32.mrf.mxu0
      %v612 = vadd.f32 0.0, %v611
      %613 = vdwg.mxu0
      %v614 = vld [vmem:[%s296] sm:$0xf]
      %v615 = vld [vmem:[%s296 + $0x4] sm:$0xf]
      %v616 = vld [vmem:[%s296 + $0x8] sm:$0xf]
      %v617 = vld [vmem:[%s296 + $0xc] sm:$0xf]
      %v618 = vld [vmem:[%s296 + $0x10] sm:$0xf]
      %v619 = vld [vmem:[%s296 + $0x14] sm:$0xf]
      %v620 = vld [vmem:[%s296 + $0x18] sm:$0xf]
      %v621 = vld [vmem:[%s296 + $0x1c] sm:$0xf]
      %v622 = vld [vmem:[%s296 + $0x20] sm:$0xf]
      %v623 = vld [vmem:[%s296 + $0x24] sm:$0xf]
      %v624 = vld [vmem:[%s296 + $0x28] sm:$0xf]
      %v625 = vld [vmem:[%s296 + $0x2c] sm:$0xf]
      %v626 = vld [vmem:[%s296 + $0x30] sm:$0xf]
      %v627 = vld [vmem:[%s296 + $0x34] sm:$0xf]
      %v628 = vld [vmem:[%s296 + $0x38] sm:$0xf]
      %v629 = vld [vmem:[%s296 + $0x3c] sm:$0xf]
      %v630 = vld [vmem:[%s302] sm:$0xf]
      %v631 = vld [vmem:[%s302 + $0x4] sm:$0xf]
      %v648 = vunpack.c.l.b16 %v614
      %v649 = vunpack.c.l.b16 %v615
      %v650 = vunpack.c.l.b16 %v616
      %v651 = vunpack.c.l.b16 %v617
      %v652 = vunpack.c.l.b16 %v618
      %v653 = vunpack.c.l.b16 %v619
      %v654 = vunpack.c.l.b16 %v620
      %v655 = vunpack.c.l.b16 %v621
      %v656 = vunpack.c.l.b16 %v622
      %v657 = vunpack.c.l.b16 %v623
      %v658 = vunpack.c.l.b16 %v624
      %v659 = vunpack.c.l.b16 %v625
      %v660 = vunpack.c.l.b16 %v626
      %v661 = vunpack.c.l.b16 %v627
      %v662 = vunpack.c.l.b16 %v628
      %v663 = vunpack.c.l.b16 %v629
      %v664 = vpack.c.b16 %v649, %v648
      %v665 = vpack.c.b16 %v651, %v650
      %v666 = vpack.c.b16 %v653, %v652
      %v667 = vpack.c.b16 %v655, %v654
      %v668 = vpack.c.b16 %v657, %v656
      %v669 = vpack.c.b16 %v659, %v658
      %v670 = vpack.c.b16 %v661, %v660
      %v671 = vpack.c.b16 %v663, %v662
      %v674 = vunpack.c.l.b16 %v630
      %v675 = vunpack.c.l.b16 %v631
      %v676 = vpack.c.b16 %v675, %v674
      %v679 = vsel %vm393, %v664, 0
      %v682 = vsel %vm393, %v665, 0
      %v685 = vsel %vm393, %v666, 0
      %v688 = vsel %vm393, %v667, 0
      %v691 = vsel %vm393, %v668, 0
      %v694 = vsel %vm393, %v669, 0
      %v697 = vsel %vm393, %v670, 0
      %v700 = vsel %vm393, %v671, 0
      %702 = vmatpush.bf16.msra.mxu0 0
      %703 = vmatpush.bf16.msra.mxu0 0
      %704 = vmatpush.bf16.msra.mxu0 0
      %705 = vmatpush.bf16.msra.mxu0 0
      %706 = vmatpush.bf16.msra.mxu0 0
      %707 = vmatpush.bf16.msra.mxu0 0
      %708 = vmatpush.bf16.msra.mxu0 0
      %709 = vmatpush.bf16.msra.mxu0 %v676
      %710 = vmatmul.bf16.gmra.mxu0 %v679
      %v711 = vpop.f32.mrf.mxu0
      %v712 = vadd.f32 0.0, %v711
      %v713 = vpop.f32.mrf.mxu0
      %v714 = vadd.f32 0.0, %v713
      %715 = vmatmul.bf16.gmra.mxu0 %v682
      %v716 = vpop.f32.mrf.mxu0
      %v717 = vadd.f32 0.0, %v716
      %v718 = vpop.f32.mrf.mxu0
      %v719 = vadd.f32 0.0, %v718
      %720 = vmatmul.bf16.gmra.mxu0 %v685
      %v721 = vpop.f32.mrf.mxu0
      %v722 = vadd.f32 0.0, %v721
      %v723 = vpop.f32.mrf.mxu0
      %v724 = vadd.f32 0.0, %v723
      %725 = vmatmul.bf16.gmra.mxu0 %v688
      %v726 = vpop.f32.mrf.mxu0
      %v727 = vadd.f32 0.0, %v726
      %v728 = vpop.f32.mrf.mxu0
      %v729 = vadd.f32 0.0, %v728
      %730 = vmatmul.bf16.gmra.mxu0 %v691
      %v731 = vpop.f32.mrf.mxu0
      %v732 = vadd.f32 0.0, %v731
      %v733 = vpop.f32.mrf.mxu0
      %v734 = vadd.f32 0.0, %v733
      %735 = vmatmul.bf16.gmra.mxu0 %v694
      %v736 = vpop.f32.mrf.mxu0
      %v737 = vadd.f32 0.0, %v736
      %v738 = vpop.f32.mrf.mxu0
      %v739 = vadd.f32 0.0, %v738
      %740 = vmatmul.bf16.gmra.mxu0 %v697
      %v741 = vpop.f32.mrf.mxu0
      %v742 = vadd.f32 0.0, %v741
      %v743 = vpop.f32.mrf.mxu0
      %v744 = vadd.f32 0.0, %v743
      %745 = vmatmul.bf16.gmra.mxu0 %v700
      %v746 = vpop.f32.mrf.mxu0
      %v747 = vadd.f32 0.0, %v746
      %v748 = vpop.f32.mrf.mxu0
      %v749 = vadd.f32 0.0, %v748
      %750 = vdwg.mxu0
      %v751 = vadd.f32 %v428, %v712
      %v752 = vadd.f32 %v430, %v714
      %v753 = vadd.f32 %v433, %v717
      %v754 = vadd.f32 %v435, %v719
      %v755 = vadd.f32 %v438, %v722
      %v756 = vadd.f32 %v440, %v724
      %v757 = vadd.f32 %v443, %v727
      %v758 = vadd.f32 %v445, %v729
      %v759 = vadd.f32 %v448, %v732
      %v760 = vadd.f32 %v450, %v734
      %v761 = vadd.f32 %v453, %v737
      %v762 = vadd.f32 %v455, %v739
      %v763 = vadd.f32 %v458, %v742
      %v764 = vadd.f32 %v460, %v744
      %v765 = vadd.f32 %v463, %v747
      %v766 = vadd.f32 %v465, %v749
      %v767 = vadd.f32 %v751, %v752
      %v768 = vadd.f32 %v767, %v753
      %v769 = vadd.f32 %v768, %v754
      %v770 = vadd.f32 %v769, %v755
      %v771 = vadd.f32 %v770, %v756
      %v772 = vadd.f32 %v771, %v757
      %v773 = vadd.f32 %v772, %v758
      %v774 = vadd.f32 %v773, %v759
      %v775 = vadd.f32 %v774, %v760
      %v776 = vadd.f32 %v775, %v761
      %v777 = vadd.f32 %v776, %v762
      %v778 = vadd.f32 %v777, %v763
      %v779 = vadd.f32 %v778, %v764
      %v780 = vadd.f32 %v779, %v765
      %v781 = vadd.f32 %v780, %v766
      %v782 = vrot.slane %v781, 4
      %v783 = vadd.f32 %v781, %v782
      %v784 = vrot.slane %v783, 2
      %v785 = vadd.f32 %v783, %v784
      %v786 = vrot.slane %v785, 1
      %v787 = vadd.f32 %v785, %v786
      %v788 = vmul.f32 %v751, %v751
      %v789 = vmul.f32 %v752, %v752
      %v790 = vmul.f32 %v753, %v753
      %v791 = vmul.f32 %v754, %v754
      %v792 = vmul.f32 %v755, %v755
      %v793 = vmul.f32 %v756, %v756
      %v794 = vmul.f32 %v757, %v757
      %v795 = vmul.f32 %v758, %v758
      %v796 = vmul.f32 %v759, %v759
      %v797 = vmul.f32 %v760, %v760
      %v798 = vmul.f32 %v761, %v761
      %v799 = vmul.f32 %v762, %v762
      %v800 = vmul.f32 %v763, %v763
      %v801 = vmul.f32 %v764, %v764
      %v802 = vmul.f32 %v765, %v765
      %v803 = vmul.f32 %v766, %v766
      %v804 = vadd.f32 %v788, %v789
      %v805 = vadd.f32 %v804, %v790
      %v806 = vadd.f32 %v805, %v791
      %v807 = vadd.f32 %v806, %v792
      %v808 = vadd.f32 %v807, %v793
      %v809 = vadd.f32 %v808, %v794
      %v810 = vadd.f32 %v809, %v795
      %v811 = vadd.f32 %v810, %v796
      %v812 = vadd.f32 %v811, %v797
      %v813 = vadd.f32 %v812, %v798
      %v814 = vadd.f32 %v813, %v799
      %v815 = vadd.f32 %v814, %v800
      %v816 = vadd.f32 %v815, %v801
      %v817 = vadd.f32 %v816, %v802
      %v818 = vadd.f32 %v817, %v803
      %v819 = vrot.slane %v818, 4
      %v820 = vadd.f32 %v818, %v819
      %v821 = vrot.slane %v820, 2
      %v822 = vadd.f32 %v820, %v821
      %v823 = vrot.slane %v822, 1
      %v824 = vadd.f32 %v822, %v823
      %s825 = scalar_lea.vmem %s296, 64
      %v826 = vld [vmem:[%s825] sm:$0xf]
      %v827 = vld [vmem:[%s825 + $0x4] sm:$0xf]
      %v828 = vld [vmem:[%s825 + $0x8] sm:$0xf]
      %v829 = vld [vmem:[%s825 + $0xc] sm:$0xf]
      %v830 = vld [vmem:[%s825 + $0x10] sm:$0xf]
      %v831 = vld [vmem:[%s825 + $0x14] sm:$0xf]
      %v832 = vld [vmem:[%s825 + $0x18] sm:$0xf]
      %v833 = vld [vmem:[%s825 + $0x1c] sm:$0xf]
      %v834 = vld [vmem:[%s825 + $0x20] sm:$0xf]
      %v835 = vld [vmem:[%s825 + $0x24] sm:$0xf]
      %v836 = vld [vmem:[%s825 + $0x28] sm:$0xf]
      %v837 = vld [vmem:[%s825 + $0x2c] sm:$0xf]
      %v838 = vld [vmem:[%s825 + $0x30] sm:$0xf]
      %v839 = vld [vmem:[%s825 + $0x34] sm:$0xf]
      %v840 = vld [vmem:[%s825 + $0x38] sm:$0xf]
      %v841 = vld [vmem:[%s825 + $0x3c] sm:$0xf]
      %s842 = scalar_lea.vmem %s302, 8
      %v843 = vld [vmem:[%s842] sm:$0xf]
      %v844 = vld [vmem:[%s842 + $0x4] sm:$0xf]
      %v861 = vunpack.c.l.b16 %v826
      %v862 = vunpack.c.l.b16 %v827
      %v863 = vunpack.c.l.b16 %v828
      %v864 = vunpack.c.l.b16 %v829
      %v865 = vunpack.c.l.b16 %v830
      %v866 = vunpack.c.l.b16 %v831
      %v867 = vunpack.c.l.b16 %v832
      %v868 = vunpack.c.l.b16 %v833
      %v869 = vunpack.c.l.b16 %v834
      %v870 = vunpack.c.l.b16 %v835
      %v871 = vunpack.c.l.b16 %v836
      %v872 = vunpack.c.l.b16 %v837
      %v873 = vunpack.c.l.b16 %v838
      %v874 = vunpack.c.l.b16 %v839
      %v875 = vunpack.c.l.b16 %v840
      %v876 = vunpack.c.l.b16 %v841
      %v877 = vpack.c.b16 %v862, %v861
      %v878 = vpack.c.b16 %v864, %v863
      %v879 = vpack.c.b16 %v866, %v865
      %v880 = vpack.c.b16 %v868, %v867
      %v881 = vpack.c.b16 %v870, %v869
      %v882 = vpack.c.b16 %v872, %v871
      %v883 = vpack.c.b16 %v874, %v873
      %v884 = vpack.c.b16 %v876, %v875
      %v887 = vunpack.c.l.b16 %v843
      %v888 = vunpack.c.l.b16 %v844
      %v889 = vpack.c.b16 %v888, %v887
      %v892 = vsel %vm393, %v877, 0
      %v895 = vsel %vm393, %v878, 0
      %v898 = vsel %vm393, %v879, 0
      %v901 = vsel %vm393, %v880, 0
      %v904 = vsel %vm393, %v881, 0
      %v907 = vsel %vm393, %v882, 0
      %v910 = vsel %vm393, %v883, 0
      %v913 = vsel %vm393, %v884, 0
      %915 = vmatpush.bf16.msra.mxu0 0
      %916 = vmatpush.bf16.msra.mxu0 0
      %917 = vmatpush.bf16.msra.mxu0 0
      %918 = vmatpush.bf16.msra.mxu0 0
      %919 = vmatpush.bf16.msra.mxu0 0
      %920 = vmatpush.bf16.msra.mxu0 0
      %921 = vmatpush.bf16.msra.mxu0 0
      %922 = vmatpush.bf16.msra.mxu0 %v889
      %923 = vmatmul.bf16.gmra.mxu0 %v892
      %v924 = vpop.f32.mrf.mxu0
      %v925 = vadd.f32 0.0, %v924
      %v926 = vpop.f32.mrf.mxu0
      %v927 = vadd.f32 0.0, %v926
      %928 = vmatmul.bf16.gmra.mxu0 %v895
      %v929 = vpop.f32.mrf.mxu0
      %v930 = vadd.f32 0.0, %v929
      %v931 = vpop.f32.mrf.mxu0
      %v932 = vadd.f32 0.0, %v931
      %933 = vmatmul.bf16.gmra.mxu0 %v898
      %v934 = vpop.f32.mrf.mxu0
      %v935 = vadd.f32 0.0, %v934
      %v936 = vpop.f32.mrf.mxu0
      %v937 = vadd.f32 0.0, %v936
      %938 = vmatmul.bf16.gmra.mxu0 %v901
      %v939 = vpop.f32.mrf.mxu0
      %v940 = vadd.f32 0.0, %v939
      %v941 = vpop.f32.mrf.mxu0
      %v942 = vadd.f32 0.0, %v941
      %943 = vmatmul.bf16.gmra.mxu0 %v904
      %v944 = vpop.f32.mrf.mxu0
      %v945 = vadd.f32 0.0, %v944
      %v946 = vpop.f32.mrf.mxu0
      %v947 = vadd.f32 0.0, %v946
      %948 = vmatmul.bf16.gmra.mxu0 %v907
      %v949 = vpop.f32.mrf.mxu0
      %v950 = vadd.f32 0.0, %v949
      %v951 = vpop.f32.mrf.mxu0
      %v952 = vadd.f32 0.0, %v951
      %953 = vmatmul.bf16.gmra.mxu0 %v910
      %v954 = vpop.f32.mrf.mxu0
      %v955 = vadd.f32 0.0, %v954
      %v956 = vpop.f32.mrf.mxu0
      %v957 = vadd.f32 0.0, %v956
      %958 = vmatmul.bf16.gmra.mxu0 %v913
      %v959 = vpop.f32.mrf.mxu0
      %v960 = vadd.f32 0.0, %v959
      %v961 = vpop.f32.mrf.mxu0
      %v962 = vadd.f32 0.0, %v961
      %963 = vdwg.mxu0
      %v964 = vadd.f32 %v477, %v925
      %v965 = vadd.f32 %v479, %v927
      %v966 = vadd.f32 %v482, %v930
      %v967 = vadd.f32 %v484, %v932
      %v968 = vadd.f32 %v487, %v935
      %v969 = vadd.f32 %v489, %v937
      %v970 = vadd.f32 %v492, %v940
      %v971 = vadd.f32 %v494, %v942
      %v972 = vadd.f32 %v497, %v945
      %v973 = vadd.f32 %v499, %v947
      %v974 = vadd.f32 %v502, %v950
      %v975 = vadd.f32 %v504, %v952
      %v976 = vadd.f32 %v507, %v955
      %v977 = vadd.f32 %v509, %v957
      %v978 = vadd.f32 %v512, %v960
      %v979 = vadd.f32 %v514, %v962
      %v980 = vadd.f32 %v964, %v965
      %v981 = vadd.f32 %v980, %v966
      %v982 = vadd.f32 %v981, %v967
      %v983 = vadd.f32 %v982, %v968
      %v984 = vadd.f32 %v983, %v969
      %v985 = vadd.f32 %v984, %v970
      %v986 = vadd.f32 %v985, %v971
      %v987 = vadd.f32 %v986, %v972
      %v988 = vadd.f32 %v987, %v973
      %v989 = vadd.f32 %v988, %v974
      %v990 = vadd.f32 %v989, %v975
      %v991 = vadd.f32 %v990, %v976
      %v992 = vadd.f32 %v991, %v977
      %v993 = vadd.f32 %v992, %v978
      %v994 = vadd.f32 %v993, %v979
      %v995 = vrot.slane %v994, 4
      %v996 = vadd.f32 %v994, %v995
      %v997 = vrot.slane %v996, 2
      %v998 = vadd.f32 %v996, %v997
      %v999 = vrot.slane %v998, 1
      %v1000 = vadd.f32 %v998, %v999
      %v1001 = vmul.f32 %v964, %v964
      %v1002 = vmul.f32 %v965, %v965
      %v1003 = vmul.f32 %v966, %v966
      %v1004 = vmul.f32 %v967, %v967
      %v1005 = vmul.f32 %v968, %v968
      %v1006 = vmul.f32 %v969, %v969
      %v1007 = vmul.f32 %v970, %v970
      %v1008 = vmul.f32 %v971, %v971
      %v1009 = vmul.f32 %v972, %v972
      %v1010 = vmul.f32 %v973, %v973
      %v1011 = vmul.f32 %v974, %v974
      %v1012 = vmul.f32 %v975, %v975
      %v1013 = vmul.f32 %v976, %v976
      %v1014 = vmul.f32 %v977, %v977
      %v1015 = vmul.f32 %v978, %v978
      %v1016 = vmul.f32 %v979, %v979
      %v1017 = vadd.f32 %v1001, %v1002
      %v1018 = vadd.f32 %v1017, %v1003
      %v1019 = vadd.f32 %v1018, %v1004
      %v1020 = vadd.f32 %v1019, %v1005
      %v1021 = vadd.f32 %v1020, %v1006
      %v1022 = vadd.f32 %v1021, %v1007
      %v1023 = vadd.f32 %v1022, %v1008
      %v1024 = vadd.f32 %v1023, %v1009
      %v1025 = vadd.f32 %v1024, %v1010
      %v1026 = vadd.f32 %v1025, %v1011
      %v1027 = vadd.f32 %v1026, %v1012
      %v1028 = vadd.f32 %v1027, %v1013
      %v1029 = vadd.f32 %v1028, %v1014
      %v1030 = vadd.f32 %v1029, %v1015
      %v1031 = vadd.f32 %v1030, %v1016
      %v1032 = vrot.slane %v1031, 4
      %v1033 = vadd.f32 %v1031, %v1032
      %v1034 = vrot.slane %v1033, 2
      %v1035 = vadd.f32 %v1033, %v1034
      %v1036 = vrot.slane %v1035, 1
      %v1037 = vadd.f32 %v1035, %v1036
      %s1038 = scalar_lea.vmem %s296, 128
      %v1039 = vld [vmem:[%s1038] sm:$0xf]
      %v1040 = vld [vmem:[%s1038 + $0x4] sm:$0xf]
      %v1041 = vld [vmem:[%s1038 + $0x8] sm:$0xf]
      %v1042 = vld [vmem:[%s1038 + $0xc] sm:$0xf]
      %v1043 = vld [vmem:[%s1038 + $0x10] sm:$0xf]
      %v1044 = vld [vmem:[%s1038 + $0x14] sm:$0xf]
      %v1045 = vld [vmem:[%s1038 + $0x18] sm:$0xf]
      %v1046 = vld [vmem:[%s1038 + $0x1c] sm:$0xf]
      %v1047 = vld [vmem:[%s1038 + $0x20] sm:$0xf]
      %v1048 = vld [vmem:[%s1038 + $0x24] sm:$0xf]
      %v1049 = vld [vmem:[%s1038 + $0x28] sm:$0xf]
      %v1050 = vld [vmem:[%s1038 + $0x2c] sm:$0xf]
      %v1051 = vld [vmem:[%s1038 + $0x30] sm:$0xf]
      %v1052 = vld [vmem:[%s1038 + $0x34] sm:$0xf]
      %v1053 = vld [vmem:[%s1038 + $0x38] sm:$0xf]
      %v1054 = vld [vmem:[%s1038 + $0x3c] sm:$0xf]
      %s1055 = scalar_lea.vmem %s302, 16
      %v1056 = vld [vmem:[%s1055] sm:$0xf]
      %v1057 = vld [vmem:[%s1055 + $0x4] sm:$0xf]
      %v1074 = vunpack.c.l.b16 %v1039
      %v1075 = vunpack.c.l.b16 %v1040
      %v1076 = vunpack.c.l.b16 %v1041
      %v1077 = vunpack.c.l.b16 %v1042
      %v1078 = vunpack.c.l.b16 %v1043
      %v1079 = vunpack.c.l.b16 %v1044
      %v1080 = vunpack.c.l.b16 %v1045
      %v1081 = vunpack.c.l.b16 %v1046
      %v1082 = vunpack.c.l.b16 %v1047
      %v1083 = vunpack.c.l.b16 %v1048
      %v1084 = vunpack.c.l.b16 %v1049
      %v1085 = vunpack.c.l.b16 %v1050
      %v1086 = vunpack.c.l.b16 %v1051
      %v1087 = vunpack.c.l.b16 %v1052
      %v1088 = vunpack.c.l.b16 %v1053
      %v1089 = vunpack.c.l.b16 %v1054
      %v1090 = vpack.c.b16 %v1075, %v1074
      %v1091 = vpack.c.b16 %v1077, %v1076
      %v1092 = vpack.c.b16 %v1079, %v1078
      %v1093 = vpack.c.b16 %v1081, %v1080
      %v1094 = vpack.c.b16 %v1083, %v1082
      %v1095 = vpack.c.b16 %v1085, %v1084
      %v1096 = vpack.c.b16 %v1087, %v1086
      %v1097 = vpack.c.b16 %v1089, %v1088
      %v1100 = vunpack.c.l.b16 %v1056
      %v1101 = vunpack.c.l.b16 %v1057
      %v1102 = vpack.c.b16 %v1101, %v1100
      %v1105 = vsel %vm393, %v1090, 0
      %v1108 = vsel %vm393, %v1091, 0
      %v1111 = vsel %vm393, %v1092, 0
      %v1114 = vsel %vm393, %v1093, 0
      %v1117 = vsel %vm393, %v1094, 0
      %v1120 = vsel %vm393, %v1095, 0
      %v1123 = vsel %vm393, %v1096, 0
      %v1126 = vsel %vm393, %v1097, 0
      %1128 = vmatpush.bf16.msra.mxu0 0
      %1129 = vmatpush.bf16.msra.mxu0 0
      %1130 = vmatpush.bf16.msra.mxu0 0
      %1131 = vmatpush.bf16.msra.mxu0 0
      %1132 = vmatpush.bf16.msra.mxu0 0
      %1133 = vmatpush.bf16.msra.mxu0 0
      %1134 = vmatpush.bf16.msra.mxu0 0
      %1135 = vmatpush.bf16.msra.mxu0 %v1102
      %1136 = vmatmul.bf16.gmra.mxu0 %v1105
      %v1137 = vpop.f32.mrf.mxu0
      %v1138 = vadd.f32 0.0, %v1137
      %v1139 = vpop.f32.mrf.mxu0
      %v1140 = vadd.f32 0.0, %v1139
      %1141 = vmatmul.bf16.gmra.mxu0 %v1108
      %v1142 = vpop.f32.mrf.mxu0
      %v1143 = vadd.f32 0.0, %v1142
      %v1144 = vpop.f32.mrf.mxu0
      %v1145 = vadd.f32 0.0, %v1144
      %1146 = vmatmul.bf16.gmra.mxu0 %v1111
      %v1147 = vpop.f32.mrf.mxu0
      %v1148 = vadd.f32 0.0, %v1147
      %v1149 = vpop.f32.mrf.mxu0
      %v1150 = vadd.f32 0.0, %v1149
      %1151 = vmatmul.bf16.gmra.mxu0 %v1114
      %v1152 = vpop.f32.mrf.mxu0
      %v1153 = vadd.f32 0.0, %v1152
      %v1154 = vpop.f32.mrf.mxu0
      %v1155 = vadd.f32 0.0, %v1154
      %1156 = vmatmul.bf16.gmra.mxu0 %v1117
      %v1157 = vpop.f32.mrf.mxu0
      %v1158 = vadd.f32 0.0, %v1157
      %v1159 = vpop.f32.mrf.mxu0
      %v1160 = vadd.f32 0.0, %v1159
      %1161 = vmatmul.bf16.gmra.mxu0 %v1120
      %v1162 = vpop.f32.mrf.mxu0
      %v1163 = vadd.f32 0.0, %v1162
      %v1164 = vpop.f32.mrf.mxu0
      %v1165 = vadd.f32 0.0, %v1164
      %1166 = vmatmul.bf16.gmra.mxu0 %v1123
      %v1167 = vpop.f32.mrf.mxu0
      %v1168 = vadd.f32 0.0, %v1167
      %v1169 = vpop.f32.mrf.mxu0
      %v1170 = vadd.f32 0.0, %v1169
      %1171 = vmatmul.bf16.gmra.mxu0 %v1126
      %v1172 = vpop.f32.mrf.mxu0
      %v1173 = vadd.f32 0.0, %v1172
      %v1174 = vpop.f32.mrf.mxu0
      %v1175 = vadd.f32 0.0, %v1174
      %1176 = vdwg.mxu0
      %v1177 = vadd.f32 %v526, %v1138
      %v1178 = vadd.f32 %v528, %v1140
      %v1179 = vadd.f32 %v531, %v1143
      %v1180 = vadd.f32 %v533, %v1145
      %v1181 = vadd.f32 %v536, %v1148
      %v1182 = vadd.f32 %v538, %v1150
      %v1183 = vadd.f32 %v541, %v1153
      %v1184 = vadd.f32 %v543, %v1155
      %v1185 = vadd.f32 %v546, %v1158
      %v1186 = vadd.f32 %v548, %v1160
      %v1187 = vadd.f32 %v551, %v1163
      %v1188 = vadd.f32 %v553, %v1165
      %v1189 = vadd.f32 %v556, %v1168
      %v1190 = vadd.f32 %v558, %v1170
      %v1191 = vadd.f32 %v561, %v1173
      %v1192 = vadd.f32 %v563, %v1175
      %v1193 = vadd.f32 %v1177, %v1178
      %v1194 = vadd.f32 %v1193, %v1179
      %v1195 = vadd.f32 %v1194, %v1180
      %v1196 = vadd.f32 %v1195, %v1181
      %v1197 = vadd.f32 %v1196, %v1182
      %v1198 = vadd.f32 %v1197, %v1183
      %v1199 = vadd.f32 %v1198, %v1184
      %v1200 = vadd.f32 %v1199, %v1185
      %v1201 = vadd.f32 %v1200, %v1186
      %v1202 = vadd.f32 %v1201, %v1187
      %v1203 = vadd.f32 %v1202, %v1188
      %v1204 = vadd.f32 %v1203, %v1189
      %v1205 = vadd.f32 %v1204, %v1190
      %v1206 = vadd.f32 %v1205, %v1191
      %v1207 = vadd.f32 %v1206, %v1192
      %v1208 = vrot.slane %v1207, 4
      %v1209 = vadd.f32 %v1207, %v1208
      %v1210 = vrot.slane %v1209, 2
      %v1211 = vadd.f32 %v1209, %v1210
      %v1212 = vrot.slane %v1211, 1
      %v1213 = vadd.f32 %v1211, %v1212
      %v1214 = vmul.f32 %v1177, %v1177
      %v1215 = vmul.f32 %v1178, %v1178
      %v1216 = vmul.f32 %v1179, %v1179
      %v1217 = vmul.f32 %v1180, %v1180
      %v1218 = vmul.f32 %v1181, %v1181
      %v1219 = vmul.f32 %v1182, %v1182
      %v1220 = vmul.f32 %v1183, %v1183
      %v1221 = vmul.f32 %v1184, %v1184
      %v1222 = vmul.f32 %v1185, %v1185
      %v1223 = vmul.f32 %v1186, %v1186
      %v1224 = vmul.f32 %v1187, %v1187
      %v1225 = vmul.f32 %v1188, %v1188
      %v1226 = vmul.f32 %v1189, %v1189
      %v1227 = vmul.f32 %v1190, %v1190
      %v1228 = vmul.f32 %v1191, %v1191
      %v1229 = vmul.f32 %v1192, %v1192
      %v1230 = vadd.f32 %v1214, %v1215
      %v1231 = vadd.f32 %v1230, %v1216
      %v1232 = vadd.f32 %v1231, %v1217
      %v1233 = vadd.f32 %v1232, %v1218
      %v1234 = vadd.f32 %v1233, %v1219
      %v1235 = vadd.f32 %v1234, %v1220
      %v1236 = vadd.f32 %v1235, %v1221
      %v1237 = vadd.f32 %v1236, %v1222
      %v1238 = vadd.f32 %v1237, %v1223
      %v1239 = vadd.f32 %v1238, %v1224
      %v1240 = vadd.f32 %v1239, %v1225
      %v1241 = vadd.f32 %v1240, %v1226
      %v1242 = vadd.f32 %v1241, %v1227
      %v1243 = vadd.f32 %v1242, %v1228
      %v1244 = vadd.f32 %v1243, %v1229
      %v1245 = vrot.slane %v1244, 4
      %v1246 = vadd.f32 %v1244, %v1245
      %v1247 = vrot.slane %v1246, 2
      %v1248 = vadd.f32 %v1246, %v1247
      %v1249 = vrot.slane %v1248, 1
      %v1250 = vadd.f32 %v1248, %v1249
      %v1251 = vadd.f32 %v575, %v577
      %v1252 = vadd.f32 %v1251, %v580
      %v1253 = vadd.f32 %v1252, %v582
      %v1254 = vadd.f32 %v1253, %v585
      %v1255 = vadd.f32 %v1254, %v587
      %v1256 = vadd.f32 %v1255, %v590
      %v1257 = vadd.f32 %v1256, %v592
      %v1258 = vadd.f32 %v1257, %v595
      %v1259 = vadd.f32 %v1258, %v597
      %v1260 = vadd.f32 %v1259, %v600
      %v1261 = vadd.f32 %v1260, %v602
      %v1262 = vadd.f32 %v1261, %v605
      %v1263 = vadd.f32 %v1262, %v607
      %v1264 = vadd.f32 %v1263, %v610
      %v1265 = vadd.f32 %v1264, %v612
      %v1266 = vrot.slane %v1265, 4
      %v1267 = vadd.f32 %v1265, %v1266
      %v1268 = vrot.slane %v1267, 2
      %v1269 = vadd.f32 %v1267, %v1268
      %v1270 = vrot.slane %v1269, 1
      %v1271 = vadd.f32 %v1269, %v1270
      %v1272 = vmul.f32 %v575, %v575
      %v1273 = vmul.f32 %v577, %v577
      %v1274 = vmul.f32 %v580, %v580
      %v1275 = vmul.f32 %v582, %v582
      %v1276 = vmul.f32 %v585, %v585
      %v1277 = vmul.f32 %v587, %v587
      %v1278 = vmul.f32 %v590, %v590
      %v1279 = vmul.f32 %v592, %v592
      %v1280 = vmul.f32 %v595, %v595
      %v1281 = vmul.f32 %v597, %v597
      %v1282 = vmul.f32 %v600, %v600
      %v1283 = vmul.f32 %v602, %v602
      %v1284 = vmul.f32 %v605, %v605
      %v1285 = vmul.f32 %v607, %v607
      %v1286 = vmul.f32 %v610, %v610
      %v1287 = vmul.f32 %v612, %v612
      %v1288 = vadd.f32 %v1272, %v1273
      %v1289 = vadd.f32 %v1288, %v1274
      %v1290 = vadd.f32 %v1289, %v1275
      %v1291 = vadd.f32 %v1290, %v1276
      %v1292 = vadd.f32 %v1291, %v1277
      %v1293 = vadd.f32 %v1292, %v1278
      %v1294 = vadd.f32 %v1293, %v1279
      %v1295 = vadd.f32 %v1294, %v1280
      %v1296 = vadd.f32 %v1295, %v1281
      %v1297 = vadd.f32 %v1296, %v1282
      %v1298 = vadd.f32 %v1297, %v1283
      %v1299 = vadd.f32 %v1298, %v1284
      %v1300 = vadd.f32 %v1299, %v1285
      %v1301 = vadd.f32 %v1300, %v1286
      %v1302 = vadd.f32 %v1301, %v1287
      %v1303 = vrot.slane %v1302, 4
      %v1304 = vadd.f32 %v1302, %v1303
      %v1305 = vrot.slane %v1304, 2
      %v1306 = vadd.f32 %v1304, %v1305
      %v1307 = vrot.slane %v1306, 1
      %v1308 = vadd.f32 %v1306, %v1307
      %v1313 = vrot.slane %v824, 7
      %v1314 = vrot.slane %v1037, 7
      %v1315 = vrot.slane %v1250, 7
      %v1316 = vrot.slane %v1308, 7
      %vm1321 = vcmask 1040384
      %v1322 = vsel %vm1321, %v787, %v1313
      %v1323 = vsel %vm1321, %v1000, %v1314
      %v1324 = vsel %vm1321, %v1213, %v1315
      %v1325 = vsel %vm1321, %v1271, %v1316
      %v1330 = vrot.slane %v1323, 6
      %v1331 = vrot.slane %v1324, 4
      %v1332 = vrot.slane %v1325, 2
      %vm1333 = vcmask 1041408
      %v1334 = vsel %vm1333, %v1322, %v1330
      %vm1335 = vcmask 1045508
      %v1336 = vsel %vm1335, %v1331, %v1332
      %vm1337 = vcmask 1043456
      %v1338 = vsel %vm1337, %v1334, %v1336
      %1340 = vst [vmem:[%s311] sm:$0xff] %v1338
      %p1341 = scmp.lt.s32.totalorder %s19, 3
      %s1342 = scalar_select %p1341, %s19, 3
      %p1343 = scmp.lt.s32.totalorder %s20, 0
      %s1344 = scalar_select %p1343, %s20, 0
      %s1345 = smul.addr %s1344, 4
      %s1346 = smul.addr %s1342, 4
      %s1347 = sadd.s32 %s1345, %s1346
      %s1348 = smul.addr %s1347, 2
      %s1349 = scalar_lea.vmem %s4, %s1348
      // Predicated region
      $region37: #{_star_layer_forward.2} parent=35 // pred_check
        %p1350 = pneg %p155
      $region38: #{_star_layer_forward.2} parent=35 // pred_check_branch
        %1352 = sbr.rel (%p1350) target = $region40
      $region39: #{_star_layer_forward.2} parent=35 // pred_region
        _
      $region40: #{_star_layer_forward.2} parent=35 // pred_fallthru
        _
    $region36: #{_star_layer_forward.2} parent=5 // pred_fallthru
      _
    %p1353 = scmp.le.s32.totalorder 2, %s10
    // Predicated region
    $region41: #{_star_layer_forward.2} parent=5 // pred_check
      %p1354 = pneg %p1353
    $region42: #{_star_layer_forward.2} parent=5 // pred_check_branch
      %1356 = sbr.rel (%p1354) target = $region44
    $region43: #{_star_layer_forward.2} parent=5 // pred_region
      %s1357 = ssub.s32 %s10, 2
      // Predicated region
      $region45: #{_star_layer_forward.2} parent=43 // pred_check
        %p1358 = pneg %p161
      $region46: #{_star_layer_forward.2} parent=43 // pred_check_branch
        %1360 = sbr.rel (%p1358) target = $region48
      $region47: #{_star_layer_forward.2} parent=43 // pred_region
        %p1361 = scmp.lt.s32.totalorder %s21, 3
        %s1362 = scalar_select %p1361, %s21, 3
        %p1363 = scmp.lt.s32.totalorder %s22, 0
        %s1364 = scalar_select %p1363, %s22, 0
        %s1365 = smul.addr %s1364, 4
        %s1366 = smul.addr %s1362, 4
        %s1367 = sadd.s32 %s1365, %s1366
        %s1368 = smul.addr %s1367, 2
        %s1369 = scalar_lea.vmem %s4, %s1368
      $region48: #{_star_layer_forward.2} parent=43 // pred_fallthru
        _
    $region44: #{_star_layer_forward.2} parent=5 // pred_fallthru
      _
  $region6: #{_star_layer_forward.2} parent=0 // loop_footer
    %s14 = sadd.s32 1, %s10
  $region7: #{_star_layer_forward.2} parent=0 // loop_footer_branch
    %9 = sbr.rel target = $region3
  $region8: #{_star_layer_forward.2} parent=0 // loop_exit
    _

// kernel: _star_layer_forward.3
$region0: #{_star_layer_forward.3}
  #allocation0 [shape = 'u32[]', space=smem, size = 0x4, offset = 0x4, fixed_abs, tag = 'smem constant byte address 0x4 - core index']
  #allocation1 [shape = 'u32[72,128]{1,0:T(1,128)}', space=vmem, size = 0x9000, scoped, tag = 'internal scratch']
  %s0 = inlined_call_operand.vmem [shape: bf16[4,128,16], index: 0, kind: input, shape index: {}]
  %s1 = inlined_call_operand.vmem [shape: bf16[4,16,512], index: 1, kind: input, shape index: {}]
  %s2 = inlined_call_operand.vmem [shape: bf16[4,3,128,16], index: 2, kind: input, shape index: {}]
  %s3 = inlined_call_operand.vmem [shape: bf16[4,3,16,128], index: 3, kind: input, shape index: {}]
  %s4 = inlined_call_operand.vmem [shape: f32[1,512], index: 4, kind: input, shape index: {}]
  %s5 = inlined_call_operand.vmem [shape: f32[1,512], index: 5, kind: input, shape index: {}]
  %s6 = inlined_call_operand.vmem [shape: bf16[4,128,512], index: 6, kind: output, shape index: {}]
  %s7 = sld [smem:[#allocation0]]
  $region57: #{_star_layer_forward.3} parent=0
    _
  %s9 = ssub.s32 1, %s7
  %s10 = scalar_select 0, %s9, %s7
  loop: start=0, step=1, limit=6
  $region2: #{_star_layer_forward.3} parent=0 // loop_pre_header
    _
  $region3: #{_star_layer_forward.3} parent=0 // loop_header
    %s12 = sphi 0, %s16
    %p13 = scmp.ge.s32.totalorder %s12, 6
    %s19 = sphi 0, %s31
    %s20 = sphi 0, %s27
    %s21 = sphi 0, %s19
    %s22 = sphi 0, %s20
    %s23 = sphi 0, %s21
    %s24 = sphi 0, %s22
    %s36 = sphi 0, %s38
    %s39 = sphi 0, %s36
    %s40 = sphi 0, %s39
    %s56 = sphi 0, %s40
    %s62 = sphi 0, %s64
    %s65 = sphi 0, %s62
    %s66 = sphi 0, %s65
    %s82 = sphi 0, %s66
    %s90 = sphi 0, %s92
    %s93 = sphi 0, %s90
    %s94 = sphi 0, %s93
    %s110 = sphi 0, %s94
    %s116 = sphi 0, %s118
    %s119 = sphi 0, %s116
    %s120 = sphi 0, %s119
    %s136 = sphi 0, %s120
    %s140 = sphi 0, %s140
    %s142 = sphi 0, %s140
    %s143 = sphi 0, %s142
    %s157 = sphi 0, %s143
    %s161 = sphi 0, %s161
    %s163 = sphi 0, %s161
    %s164 = sphi 0, %s163
    %s178 = sphi 0, %s164
    %s186 = sphi 0, %s188
    %s189 = sphi 0, %s186
    %s190 = sphi 0, %s189
    %s206 = sphi 0, %s190
  $region4: #{_star_layer_forward.3} parent=0 // loop_header_branch
    %15 = sbr.rel (%p13) target = $region8
  $region5: #{_star_layer_forward.3} parent=0 // loop_body
    %s17 = ssub.s32 %s12, 1
    %s18 = ssub.s32 %s12, 2
    %s25 = sadd.s32 1, %s20
    %p26 = scmp.ge.s32.totalorder %s25, 1
    %s27 = scalar_select %p26, 0, %s25
    %s28 = sadd.s32 1, %s19
    %s29 = scalar_select %p26, %s28, %s19
    %p30 = scmp.ge.s32.totalorder %s29, 4
    %s31 = scalar_select %p30, 0, %s29
    %s32 = ssub.s32 %s19, %s31
    %s33 = ssub.s32 %s20, %s27
    %s34 = sor.u32 %s32, %s33
    %p35 = scmp.eq.s32.totalorder %s34, 0
    %s37 = sadd.s32 %s36, 1
    %s38 = scalar_select %p35, %s36, %s37
    %p41 = pneg %p35
    %p42 = scmp.eq.s32.totalorder %s12, 3
    %p43 = por %p41, %p42
    %p44 = scmp.ne.s32.totalorder %s36, %s39
    %p45 = scmp.eq.s32.totalorder %s12, 0
    %p46 = por %p44, %p45
    %p47 = scmp.ne.s32.totalorder %s36, %s39
    %p48 = scmp.eq.s32.totalorder %s17, 3
    %p49 = por %p47, %p48
    %p50 = scmp.ne.s32.totalorder %s39, %s40
    %p51 = scmp.eq.s32.totalorder %s17, 0
    %p52 = por %p50, %p51
    %p53 = scmp.ne.s32.totalorder %s39, %s40
    %p54 = scmp.eq.s32.totalorder %s18, 3
    %p55 = por %p53, %p54
    %p57 = scmp.ne.s32.totalorder %s40, %s56
    %p58 = scmp.eq.s32.totalorder %s18, 0
    %p59 = por %p57, %p58
    %s60 = ssub.s32 %s19, %s31
    %p61 = scmp.eq.s32.totalorder %s60, 0
    %s63 = sadd.s32 %s62, 1
    %s64 = scalar_select %p61, %s62, %s63
    %p67 = pneg %p61
    %p68 = scmp.eq.s32.totalorder %s12, 3
    %p69 = por %p67, %p68
    %p70 = scmp.ne.s32.totalorder %s62, %s65
    %p71 = scmp.eq.s32.totalorder %s12, 0
    %p72 = por %p70, %p71
    %p73 = scmp.ne.s32.totalorder %s62, %s65
    %p74 = scmp.eq.s32.totalorder %s17, 3
    %p75 = por %p73, %p74
    %p76 = scmp.ne.s32.totalorder %s65, %s66
    %p77 = scmp.eq.s32.totalorder %s17, 0
    %p78 = por %p76, %p77
    %p79 = scmp.ne.s32.totalorder %s65, %s66
    %p80 = scmp.eq.s32.totalorder %s18, 3
    %p81 = por %p79, %p80
    %p83 = scmp.ne.s32.totalorder %s66, %s82
    %p84 = scmp.eq.s32.totalorder %s18, 0
    %p85 = por %p83, %p84
    %s86 = ssub.s32 %s19, %s31
    %s87 = ssub.s32 %s20, %s27
    %s88 = sor.u32 %s86, %s87
    %p89 = scmp.eq.s32.totalorder %s88, 0
    %s91 = sadd.s32 %s90, 1
    %s92 = scalar_select %p89, %s90, %s91
    %p95 = pneg %p89
    %p96 = scmp.eq.s32.totalorder %s12, 3
    %p97 = por %p95, %p96
    %p98 = scmp.ne.s32.totalorder %s90, %s93
    %p99 = scmp.eq.s32.totalorder %s12, 0
    %p100 = por %p98, %p99
    %p101 = scmp.ne.s32.totalorder %s90, %s93
    %p102 = scmp.eq.s32.totalorder %s17, 3
    %p103 = por %p101, %p102
    %p104 = scmp.ne.s32.totalorder %s93, %s94
    %p105 = scmp.eq.s32.totalorder %s17, 0
    %p106 = por %p104, %p105
    %p107 = scmp.ne.s32.totalorder %s93, %s94
    %p108 = scmp.eq.s32.totalorder %s18, 3
    %p109 = por %p107, %p108
    %p111 = scmp.ne.s32.totalorder %s94, %s110
    %p112 = scmp.eq.s32.totalorder %s18, 0
    %p113 = por %p111, %p112
    %s114 = ssub.s32 %s19, %s31
    %p115 = scmp.eq.s32.totalorder %s114, 0
    %s117 = sadd.s32 %s116, 1
    %s118 = scalar_select %p115, %s116, %s117
    %p121 = pneg %p115
    %p122 = scmp.eq.s32.totalorder %s12, 3
    %p123 = por %p121, %p122
    %p124 = scmp.ne.s32.totalorder %s116, %s119
    %p125 = scmp.eq.s32.totalorder %s12, 0
    %p126 = por %p124, %p125
    %p127 = scmp.ne.s32.totalorder %s116, %s119
    %p128 = scmp.eq.s32.totalorder %s17, 3
    %p129 = por %p127, %p128
    %p130 = scmp.ne.s32.totalorder %s119, %s120
    %p131 = scmp.eq.s32.totalorder %s17, 0
    %p132 = por %p130, %p131
    %p133 = scmp.ne.s32.totalorder %s119, %s120
    %p134 = scmp.eq.s32.totalorder %s18, 3
    %p135 = por %p133, %p134
    %p137 = scmp.ne.s32.totalorder %s120, %s136
    %p138 = scmp.eq.s32.totalorder %s18, 0
    %p139 = por %p137, %p138
    %s141 = sadd.s32 %s140, 1
    %p144 = scmp.eq.s32.totalorder %s12, 3
    %p145 = scmp.ne.s32.totalorder %s140, %s142
    %p146 = scmp.eq.s32.totalorder %s12, 0
    %p147 = por %p145, %p146
    %p148 = scmp.ne.s32.totalorder %s140, %s142
    %p149 = scmp.eq.s32.totalorder %s17, 3
    %p150 = por %p148, %p149
    %p151 = scmp.ne.s32.totalorder %s142, %s143
    %p152 = scmp.eq.s32.totalorder %s17, 0
    %p153 = por %p151, %p152
    %p154 = scmp.ne.s32.totalorder %s142, %s143
    %p155 = scmp.eq.s32.totalorder %s18, 3
    %p156 = por %p154, %p155
    %p158 = scmp.ne.s32.totalorder %s143, %s157
    %p159 = scmp.eq.s32.totalorder %s18, 0
    %p160 = por %p158, %p159
    %s162 = sadd.s32 %s161, 1
    %p165 = scmp.eq.s32.totalorder %s12, 3
    %p166 = scmp.ne.s32.totalorder %s161, %s163
    %p167 = scmp.eq.s32.totalorder %s12, 0
    %p168 = por %p166, %p167
    %p169 = scmp.ne.s32.totalorder %s161, %s163
    %p170 = scmp.eq.s32.totalorder %s17, 3
    %p171 = por %p169, %p170
    %p172 = scmp.ne.s32.totalorder %s163, %s164
    %p173 = scmp.eq.s32.totalorder %s17, 0
    %p174 = por %p172, %p173
    %p175 = scmp.ne.s32.totalorder %s163, %s164
    %p176 = scmp.eq.s32.totalorder %s18, 3
    %p177 = por %p175, %p176
    %p179 = scmp.ne.s32.totalorder %s164, %s178
    %p180 = scmp.eq.s32.totalorder %s18, 0
    %p181 = por %p179, %p180
    %s182 = ssub.s32 %s19, %s31
    %s183 = ssub.s32 %s20, %s27
    %s184 = sor.u32 %s182, %s183
    %p185 = scmp.eq.s32.totalorder %s184, 0
    %s187 = sadd.s32 %s186, 1
    %s188 = scalar_select %p185, %s186, %s187
    %p191 = pneg %p185
    %p192 = scmp.eq.s32.totalorder %s12, 3
    %p193 = por %p191, %p192
    %p194 = scmp.ne.s32.totalorder %s186, %s189
    %p195 = scmp.eq.s32.totalorder %s12, 0
    %p196 = por %p194, %p195
    %p197 = scmp.ne.s32.totalorder %s186, %s189
    %p198 = scmp.eq.s32.totalorder %s17, 3
    %p199 = por %p197, %p198
    %p200 = scmp.ne.s32.totalorder %s189, %s190
    %p201 = scmp.eq.s32.totalorder %s17, 0
    %p202 = por %p200, %p201
    %p203 = scmp.ne.s32.totalorder %s189, %s190
    %p204 = scmp.eq.s32.totalorder %s18, 3
    %p205 = por %p203, %p204
    %p207 = scmp.ne.s32.totalorder %s190, %s206
    %p208 = scmp.eq.s32.totalorder %s18, 0
    %p209 = por %p207, %p208
    %p210 = scmp.le.s32.totalorder 1, %s12
    %p211 = scmp.lt.s32.totalorder %s12, 5
    %p212 = pnand %p210, %p211
    %p213 = pneg %p212
    // Predicated region
    $region9: #{_star_layer_forward.3} parent=5 // pred_check
      _
    $region10: #{_star_layer_forward.3} parent=5 // pred_check_branch
      %215 = sbr.rel (%p212) target = $region12
    $region11: #{_star_layer_forward.3} parent=5 // pred_region
      %s216 = ssub.s32 %s12, 1
      // Predicated region
      $region13: #{_star_layer_forward.3} parent=11 // pred_check
        %p217 = pneg %p153
      $region14: #{_star_layer_forward.3} parent=11 // pred_check_branch
        %219 = sbr.rel (%p217) target = $region16
      $region15: #{_star_layer_forward.3} parent=11 // pred_region
        _
      $region16: #{_star_layer_forward.3} parent=11 // pred_fallthru
        _
      // Predicated region
      $region17: #{_star_layer_forward.3} parent=11 // pred_check
        %p220 = pneg %p174
      $region18: #{_star_layer_forward.3} parent=11 // pred_check_branch
        %222 = sbr.rel (%p220) target = $region20
      $region19: #{_star_layer_forward.3} parent=11 // pred_region
        _
      $region20: #{_star_layer_forward.3} parent=11 // pred_fallthru
        _
    $region12: #{_star_layer_forward.3} parent=5 // pred_fallthru
      _
    %p223 = scmp.lt.s32.totalorder %s12, 4
    // Predicated region
    $region21: #{_star_layer_forward.3} parent=5 // pred_check
      %p224 = pneg %p223
    $region22: #{_star_layer_forward.3} parent=5 // pred_check_branch
      %226 = sbr.rel (%p224) target = $region24
    $region23: #{_star_layer_forward.3} parent=5 // pred_region
      // Predicated region
      $region25: #{_star_layer_forward.3} parent=23 // pred_check
        %p227 = pneg %p46
      $region26: #{_star_layer_forward.3} parent=23 // pred_check_branch
        %229 = sbr.rel (%p227) target = $region28
      $region27: #{_star_layer_forward.3} parent=23 // pred_region
        %s230 = smul.u32 16, %s20
        %p231 = scmp.lt.s32.totalorder %s19, 3
        %s232 = scalar_select %p231, %s19, 3
        %p233 = scmp.lt.s32.totalorder %s230, 15
        %s234 = scalar_select %p233, %s230, 15
        %s235 = smul.addr %s232, 16
        %s236 = sadd.s32 %s234, %s235
        %s237 = smul.addr %s236, 4
        %s238 = scalar_lea.vmem %s0, %s237
        %s239 = smul.u32 16, %s20
      $region28: #{_star_layer_forward.3} parent=23 // pred_fallthru
        _
      // Predicated region
      $region29: #{_star_layer_forward.3} parent=23 // pred_check
        %p240 = pneg %p72
      $region30: #{_star_layer_forward.3} parent=23 // pred_check_branch
        %242 = sbr.rel (%p240) target = $region32
      $region31: #{_star_layer_forward.3} parent=23 // pred_region
        %p243 = scmp.lt.s32.totalorder %s19, 3
        %s244 = scalar_select %p243, %s19, 3
        %s245 = smul.addr %s244, 8
        %s246 = smul.addr %s245, 4
        %s247 = scalar_lea.vmem %s1, %s246
      $region32: #{_star_layer_forward.3} parent=23 // pred_fallthru
        _
      // Predicated region
      $region33: #{_star_layer_forward.3} parent=23 // pred_check
        %p248 = pneg %p100
      $region34: #{_star_layer_forward.3} parent=23 // pred_check_branch
        %250 = sbr.rel (%p248) target = $region36
      $region35: #{_star_layer_forward.3} parent=23 // pred_region
        %s251 = smul.u32 16, %s20
        %p252 = scmp.lt.s32.totalorder %s19, 3
        %s253 = scalar_select %p252, %s19, 3
        %p254 = scmp.lt.s32.totalorder %s251, 15
        %s255 = scalar_select %p254, %s251, 15
        %s256 = smul.addr %s253, 48
        %s257 = sadd.s32 %s255, %s256
        %s258 = smul.addr %s257, 4
        %s259 = scalar_lea.vmem %s2, %s258
        %s260 = smul.u32 16, %s20
      $region36: #{_star_layer_forward.3} parent=23 // pred_fallthru
        _
      // Predicated region
      $region37: #{_star_layer_forward.3} parent=23 // pred_check
        %p261 = pneg %p126
      $region38: #{_star_layer_forward.3} parent=23 // pred_check_branch
        %263 = sbr.rel (%p261) target = $region40
      $region39: #{_star_layer_forward.3} parent=23 // pred_region
        %p264 = scmp.lt.s32.totalorder %s19, 3
        %s265 = scalar_select %p264, %s19, 3
        %s266 = smul.addr %s265, 6
        %s267 = smul.addr %s266, 4
        %s268 = scalar_lea.vmem %s3, %s267
      $region40: #{_star_layer_forward.3} parent=23 // pred_fallthru
        _
    $region24: #{_star_layer_forward.3} parent=5 // pred_fallthru
      _
    %p269 = scmp.le.s32.totalorder 1, %s12
    %p270 = scmp.lt.s32.totalorder %s12, 5
    %p271 = pnand %p269, %p270
    %p272 = pneg %p271
    // Predicated region
    $region41: #{_star_layer_forward.3} parent=5 // pred_check
      _
    $region42: #{_star_layer_forward.3} parent=5 // pred_check_branch
      %274 = sbr.rel (%p271) target = $region44
    $region43: #{_star_layer_forward.3} parent=5 // pred_region
      %s275 = ssub.s32 %s12, 1
      %s276 = smul.u32 16, %s22
      %p277 = scmp.lt.s32.totalorder %s21, 3
      %s278 = scalar_select %p277, %s21, 3
      %p279 = scmp.lt.s32.totalorder %s276, 15
      %s280 = scalar_select %p279, %s276, 15
      %s281 = smul.addr %s278, 16
      %s282 = sadd.s32 %s280, %s281
      %s283 = smul.addr %s282, 4
      %s284 = scalar_lea.vmem %s0, %s283
      %p285 = pneg %p52
      %p286 = pneg %p49
      %p287 = scmp.lt.s32.totalorder %s21, 3
      %s288 = scalar_select %p287, %s21, 3
      %s289 = smul.addr %s288, 8
      %s290 = smul.addr %s289, 4
      %s291 = scalar_lea.vmem %s1, %s290
      %p292 = pneg %p78
      %p293 = pneg %p75
      %s294 = smul.u32 16, %s22
      %p295 = scmp.lt.s32.totalorder %s21, 3
      %s296 = scalar_select %p295, %s21, 3
      %p297 = scmp.lt.s32.totalorder %s294, 15
      %s298 = scalar_select %p297, %s294, 15
      %s299 = smul.addr %s296, 48
      %s300 = sadd.s32 %s298, %s299
      %s301 = smul.addr %s300, 4
      %s302 = scalar_lea.vmem %s2, %s301
      %p303 = pneg %p106
      %p304 = pneg %p103
      %p305 = scmp.lt.s32.totalorder %s21, 3
      %s306 = scalar_select %p305, %s21, 3
      %s307 = smul.addr %s306, 6
      %s308 = smul.addr %s307, 4
      %s309 = scalar_lea.vmem %s3, %s308
      %p310 = pneg %p132
      %p311 = pneg %p129
      %p312 = pneg %p153
      %p313 = pneg %p150
      %p314 = pneg %p174
      %p315 = pneg %p171
      %p316 = pneg %p202
      %p317 = pneg %p199
      %s318 = smul.u32 16, %s22
      %p319 = scmp.lt.s32.totalorder %s21, 3
      %s320 = scalar_select %p319, %s21, 3
      %p321 = scmp.lt.s32.totalorder %s318, 15
      %s322 = scalar_select %p321, %s318, 15
      %s323 = smul.addr %s322, 4
      %s324 = smul.addr %s320, 64
      %s325 = sadd.s32 %s323, %s324
      %s326 = smul.addr %s325, 4
      %s327 = scalar_lea.vmem %s6, %s326
      %s328 = smul.u32 16, %s22
      %p329 = scmp.lt.s32.totalorder %s21, 3
      %s330 = scalar_select %p329, %s21, 3
      %p331 = scmp.lt.s32.totalorder %s328, 15
      %s332 = scalar_select %p331, %s328, 15
      %s333 = smul.addr %s330, 16
      %s334 = sadd.s32 %s332, %s333
      %s335 = smul.addr %s334, 4
      %s336 = scalar_lea.vmem %s0, %s335
      %s337 = smul.u32 16, %s22
      %p338 = scmp.lt.s32.totalorder %s21, 3
      %s339 = scalar_select %p338, %s21, 3
      %s340 = smul.addr %s339, 8
      %s341 = smul.addr %s340, 4
      %s342 = scalar_lea.vmem %s1, %s341
      %s343 = smul.u32 16, %s22
      %p344 = scmp.lt.s32.totalorder %s21, 3
      %s345 = scalar_select %p344, %s21, 3
      %p346 = scmp.lt.s32.totalorder %s343, 15
      %s347 = scalar_select %p346, %s343, 15
      %s348 = smul.addr %s345, 48
      %s349 = sadd.s32 %s347, %s348
      %s350 = smul.addr %s349, 4
      %s351 = scalar_lea.vmem %s2, %s350
      %s352 = smul.u32 16, %s22
      %p353 = scmp.lt.s32.totalorder %s21, 3
      %s354 = scalar_select %p353, %s21, 3
      %s355 = smul.addr %s354, 6
      %s356 = smul.addr %s355, 4
      %s357 = scalar_lea.vmem %s3, %s356
      %s358 = smul.u32 16, %s22
      %p359 = scmp.lt.s32.totalorder %s21, 3
      %s360 = scalar_select %p359, %s21, 3
      %p361 = scmp.lt.s32.totalorder %s358, 15
      %s362 = scalar_select %p361, %s358, 15
      %s363 = smul.addr %s362, 4
      %s364 = smul.addr %s360, 64
      %s365 = sadd.s32 %s363, %s364
      %s366 = smul.addr %s365, 4
      %s367 = scalar_lea.vmem %s6, %s366
      %s368 = smul.u32 16, %s22
      %v370 = vld [vmem:[%s336] sm:$0xf]
      %v371 = vld [vmem:[%s336 + $0x4] sm:$0xf]
      %v372 = vld [vmem:[%s336 + $0x8] sm:$0xf]
      %v373 = vld [vmem:[%s336 + $0xc] sm:$0xf]
      %v374 = vld [vmem:[%s336 + $0x10] sm:$0xf]
      %v375 = vld [vmem:[%s336 + $0x14] sm:$0xf]
      %v376 = vld [vmem:[%s336 + $0x18] sm:$0xf]
      %v377 = vld [vmem:[%s336 + $0x1c] sm:$0xf]
      %v378 = vld [vmem:[%s336 + $0x20] sm:$0xf]
      %v379 = vld [vmem:[%s336 + $0x24] sm:$0xf]
      %v380 = vld [vmem:[%s336 + $0x28] sm:$0xf]
      %v381 = vld [vmem:[%s336 + $0x2c] sm:$0xf]
      %v382 = vld [vmem:[%s336 + $0x30] sm:$0xf]
      %v383 = vld [vmem:[%s336 + $0x34] sm:$0xf]
      %v384 = vld [vmem:[%s336 + $0x38] sm:$0xf]
      %v385 = vld [vmem:[%s336 + $0x3c] sm:$0xf]
      %v386 = vld [vmem:[%s342] sm:$0xff]
      %v387 = vld [vmem:[%s342 + $0x8] sm:$0xff]
      %v388 = vld [vmem:[%s342 + $0x10] sm:$0xff]
      %v389 = vld [vmem:[%s342 + $0x18] sm:$0xff]
      %v406 = vunpack.c.l.b16 %v370
      %v407 = vunpack.c.l.b16 %v371
      %v408 = vunpack.c.l.b16 %v372
      %v409 = vunpack.c.l.b16 %v373
      %v410 = vunpack.c.l.b16 %v374
      %v411 = vunpack.c.l.b16 %v375
      %v412 = vunpack.c.l.b16 %v376
      %v413 = vunpack.c.l.b16 %v377
      %v414 = vunpack.c.l.b16 %v378
      %v415 = vunpack.c.l.b16 %v379
      %v416 = vunpack.c.l.b16 %v380
      %v417 = vunpack.c.l.b16 %v381
      %v418 = vunpack.c.l.b16 %v382
      %v419 = vunpack.c.l.b16 %v383
      %v420 = vunpack.c.l.b16 %v384
      %v421 = vunpack.c.l.b16 %v385
      %v422 = vpack.c.b16 %v407, %v406
      %v423 = vpack.c.b16 %v409, %v408
      %v424 = vpack.c.b16 %v411, %v410
      %v425 = vpack.c.b16 %v413, %v412
      %v426 = vpack.c.b16 %v415, %v414
      %v427 = vpack.c.b16 %v417, %v416
      %v428 = vpack.c.b16 %v419, %v418
      %v429 = vpack.c.b16 %v421, %v420
      %v434 = vunpack.c.l.b16 %v386
      %v435 = vunpack.c.h.b16 %v386
      %v436 = vunpack.c.l.b16 %v387
      %v437 = vunpack.c.h.b16 %v387
      %v438 = vunpack.c.l.b16 %v388
      %v439 = vunpack.c.h.b16 %v388
      %v440 = vunpack.c.l.b16 %v389
      %v441 = vunpack.c.h.b16 %v389
      %v442 = vpack.c.b16 %v438, %v434
      %v443 = vpack.c.b16 %v439, %v435
      %v444 = vpack.c.b16 %v440, %v436
      %v445 = vpack.c.b16 %v441, %v437
      %vm450 = vcmask 130048
      %v452 = vsel %vm450, %v422, 0
      %v455 = vsel %vm450, %v423, 0
      %v458 = vsel %vm450, %v424, 0
      %v461 = vsel %vm450, %v425, 0
      %v464 = vsel %vm450, %v426, 0
      %v467 = vsel %vm450, %v427, 0
      %v470 = vsel %vm450, %v428, 0
      %v473 = vsel %vm450, %v429, 0
      %475 = vmatpush.bf16.msra.mxu0 0
      %476 = vmatpush.bf16.msra.mxu0 0
      %477 = vmatpush.bf16.msra.mxu0 0
      %478 = vmatpush.bf16.msra.mxu0 0
      %479 = vmatpush.bf16.msra.mxu0 0
      %480 = vmatpush.bf16.msra.mxu0 0
      %481 = vmatpush.bf16.msra.mxu0 0
      %482 = vmatpush.bf16.msra.mxu0 %v442
      %483 = vmatmul.bf16.gmra.mxu0 %v452
      %v484 = vpop.f32.mrf.mxu0
      %v485 = vadd.f32 0.0, %v484
      %v486 = vpop.f32.mrf.mxu0
      %v487 = vadd.f32 0.0, %v486
      %488 = vmatmul.bf16.gmra.mxu0 %v455
      %v489 = vpop.f32.mrf.mxu0
      %v490 = vadd.f32 0.0, %v489
      %v491 = vpop.f32.mrf.mxu0
      %v492 = vadd.f32 0.0, %v491
      %493 = vmatmul.bf16.gmra.mxu0 %v458
      %v494 = vpop.f32.mrf.mxu0
      %v495 = vadd.f32 0.0, %v494
      %v496 = vpop.f32.mrf.mxu0
      %v497 = vadd.f32 0.0, %v496
      %498 = vmatmul.bf16.gmra.mxu0 %v461
      %v499 = vpop.f32.mrf.mxu0
      %v500 = vadd.f32 0.0, %v499
      %v501 = vpop.f32.mrf.mxu0
      %v502 = vadd.f32 0.0, %v501
      %503 = vmatmul.bf16.gmra.mxu0 %v464
      %v504 = vpop.f32.mrf.mxu0
      %v505 = vadd.f32 0.0, %v504
      %v506 = vpop.f32.mrf.mxu0
      %v507 = vadd.f32 0.0, %v506
      %508 = vmatmul.bf16.gmra.mxu0 %v467
      %v509 = vpop.f32.mrf.mxu0
      %v510 = vadd.f32 0.0, %v509
      %v511 = vpop.f32.mrf.mxu0
      %v512 = vadd.f32 0.0, %v511
      %513 = vmatmul.bf16.gmra.mxu0 %v470
      %v514 = vpop.f32.mrf.mxu0
      %v515 = vadd.f32 0.0, %v514
      %v516 = vpop.f32.mrf.mxu0
      %v517 = vadd.f32 0.0, %v516
      %518 = vmatmul.bf16.gmra.mxu0 %v473
      %v519 = vpop.f32.mrf.mxu0
      %v520 = vadd.f32 0.0, %v519
      %v521 = vpop.f32.mrf.mxu0
      %v522 = vadd.f32 0.0, %v521
      %523 = vdwg.mxu0
      %524 = vmatpush.bf16.msra.mxu0 0
      %525 = vmatpush.bf16.msra.mxu0 0
      %526 = vmatpush.bf16.msra.mxu0 0
      %527 = vmatpush.bf16.msra.mxu0 0
      %528 = vmatpush.bf16.msra.mxu0 0
      %529 = vmatpush.bf16.msra.mxu0 0
      %530 = vmatpush.bf16.msra.mxu0 0
      %531 = vmatpush.bf16.msra.mxu0 %v443
      %532 = vmatmul.bf16.gmra.mxu0 %v452
      %v533 = vpop.f32.mrf.mxu0
      %v534 = vadd.f32 0.0, %v533
      %v535 = vpop.f32.mrf.mxu0
      %v536 = vadd.f32 0.0, %v535
      %537 = vmatmul.bf16.gmra.mxu0 %v455
      %v538 = vpop.f32.mrf.mxu0
      %v539 = vadd.f32 0.0, %v538
      %v540 = vpop.f32.mrf.mxu0
      %v541 = vadd.f32 0.0, %v540
      %542 = vmatmul.bf16.gmra.mxu0 %v458
      %v543 = vpop.f32.mrf.mxu0
      %v544 = vadd.f32 0.0, %v543
      %v545 = vpop.f32.mrf.mxu0
      %v546 = vadd.f32 0.0, %v545
      %547 = vmatmul.bf16.gmra.mxu0 %v461
      %v548 = vpop.f32.mrf.mxu0
      %v549 = vadd.f32 0.0, %v548
      %v550 = vpop.f32.mrf.mxu0
      %v551 = vadd.f32 0.0, %v550
      %552 = vmatmul.bf16.gmra.mxu0 %v464
      %v553 = vpop.f32.mrf.mxu0
      %v554 = vadd.f32 0.0, %v553
      %v555 = vpop.f32.mrf.mxu0
      %v556 = vadd.f32 0.0, %v555
      %557 = vmatmul.bf16.gmra.mxu0 %v467
      %v558 = vpop.f32.mrf.mxu0
      %v559 = vadd.f32 0.0, %v558
      %v560 = vpop.f32.mrf.mxu0
      %v561 = vadd.f32 0.0, %v560
      %562 = vmatmul.bf16.gmra.mxu0 %v470
      %v563 = vpop.f32.mrf.mxu0
      %v564 = vadd.f32 0.0, %v563
      %v565 = vpop.f32.mrf.mxu0
      %v566 = vadd.f32 0.0, %v565
      %567 = vmatmul.bf16.gmra.mxu0 %v473
      %v568 = vpop.f32.mrf.mxu0
      %v569 = vadd.f32 0.0, %v568
      %v570 = vpop.f32.mrf.mxu0
      %v571 = vadd.f32 0.0, %v570
      %572 = vdwg.mxu0
      %573 = vmatpush.bf16.msra.mxu0 0
      %574 = vmatpush.bf16.msra.mxu0 0
      %575 = vmatpush.bf16.msra.mxu0 0
      %576 = vmatpush.bf16.msra.mxu0 0
      %577 = vmatpush.bf16.msra.mxu0 0
      %578 = vmatpush.bf16.msra.mxu0 0
      %579 = vmatpush.bf16.msra.mxu0 0
      %580 = vmatpush.bf16.msra.mxu0 %v444
      %581 = vmatmul.bf16.gmra.mxu0 %v452
      %v582 = vpop.f32.mrf.mxu0
      %v583 = vadd.f32 0.0, %v582
      %v584 = vpop.f32.mrf.mxu0
      %v585 = vadd.f32 0.0, %v584
      %586 = vmatmul.bf16.gmra.mxu0 %v455
      %v587 = vpop.f32.mrf.mxu0
      %v588 = vadd.f32 0.0, %v587
      %v589 = vpop.f32.mrf.mxu0
      %v590 = vadd.f32 0.0, %v589
      %591 = vmatmul.bf16.gmra.mxu0 %v458
      %v592 = vpop.f32.mrf.mxu0
      %v593 = vadd.f32 0.0, %v592
      %v594 = vpop.f32.mrf.mxu0
      %v595 = vadd.f32 0.0, %v594
      %596 = vmatmul.bf16.gmra.mxu0 %v461
      %v597 = vpop.f32.mrf.mxu0
      %v598 = vadd.f32 0.0, %v597
      %v599 = vpop.f32.mrf.mxu0
      %v600 = vadd.f32 0.0, %v599
      %601 = vmatmul.bf16.gmra.mxu0 %v464
      %v602 = vpop.f32.mrf.mxu0
      %v603 = vadd.f32 0.0, %v602
      %v604 = vpop.f32.mrf.mxu0
      %v605 = vadd.f32 0.0, %v604
      %606 = vmatmul.bf16.gmra.mxu0 %v467
      %v607 = vpop.f32.mrf.mxu0
      %v608 = vadd.f32 0.0, %v607
      %v609 = vpop.f32.mrf.mxu0
      %v610 = vadd.f32 0.0, %v609
      %611 = vmatmul.bf16.gmra.mxu0 %v470
      %v612 = vpop.f32.mrf.mxu0
      %v613 = vadd.f32 0.0, %v612
      %v614 = vpop.f32.mrf.mxu0
      %v615 = vadd.f32 0.0, %v614
      %616 = vmatmul.bf16.gmra.mxu0 %v473
      %v617 = vpop.f32.mrf.mxu0
      %v618 = vadd.f32 0.0, %v617
      %v619 = vpop.f32.mrf.mxu0
      %v620 = vadd.f32 0.0, %v619
      %621 = vdwg.mxu0
      %622 = vmatpush.bf16.msra.mxu0 0
      %623 = vmatpush.bf16.msra.mxu0 0
      %624 = vmatpush.bf16.msra.mxu0 0
      %625 = vmatpush.bf16.msra.mxu0 0
      %626 = vmatpush.bf16.msra.mxu0 0
      %627 = vmatpush.bf16.msra.mxu0 0
      %628 = vmatpush.bf16.msra.mxu0 0
      %629 = vmatpush.bf16.msra.mxu0 %v445
      %630 = vmatmul.bf16.gmra.mxu0 %v452
      %v631 = vpop.f32.mrf.mxu0
      %v632 = vadd.f32 0.0, %v631
      %v633 = vpop.f32.mrf.mxu0
      %v634 = vadd.f32 0.0, %v633
      %635 = vmatmul.bf16.gmra.mxu0 %v455
      %v636 = vpop.f32.mrf.mxu0
      %v637 = vadd.f32 0.0, %v636
      %v638 = vpop.f32.mrf.mxu0
      %v639 = vadd.f32 0.0, %v638
      %640 = vmatmul.bf16.gmra.mxu0 %v458
      %v641 = vpop.f32.mrf.mxu0
      %v642 = vadd.f32 0.0, %v641
      %v643 = vpop.f32.mrf.mxu0
      %v644 = vadd.f32 0.0, %v643
      %645 = vmatmul.bf16.gmra.mxu0 %v461
      %v646 = vpop.f32.mrf.mxu0
      %v647 = vadd.f32 0.0, %v646
      %v648 = vpop.f32.mrf.mxu0
      %v649 = vadd.f32 0.0, %v648
      %650 = vmatmul.bf16.gmra.mxu0 %v464
      %v651 = vpop.f32.mrf.mxu0
      %v652 = vadd.f32 0.0, %v651
      %v653 = vpop.f32.mrf.mxu0
      %v654 = vadd.f32 0.0, %v653
      %655 = vmatmul.bf16.gmra.mxu0 %v467
      %v656 = vpop.f32.mrf.mxu0
      %v657 = vadd.f32 0.0, %v656
      %v658 = vpop.f32.mrf.mxu0
      %v659 = vadd.f32 0.0, %v658
      %660 = vmatmul.bf16.gmra.mxu0 %v470
      %v661 = vpop.f32.mrf.mxu0
      %v662 = vadd.f32 0.0, %v661
      %v663 = vpop.f32.mrf.mxu0
      %v664 = vadd.f32 0.0, %v663
      %665 = vmatmul.bf16.gmra.mxu0 %v473
      %v666 = vpop.f32.mrf.mxu0
      %v667 = vadd.f32 0.0, %v666
      %v668 = vpop.f32.mrf.mxu0
      %v669 = vadd.f32 0.0, %v668
      %670 = vdwg.mxu0
      %v671 = vld [vmem:[%s351] sm:$0xf]
      %v672 = vld [vmem:[%s351 + $0x4] sm:$0xf]
      %v673 = vld [vmem:[%s351 + $0x8] sm:$0xf]
      %v674 = vld [vmem:[%s351 + $0xc] sm:$0xf]
      %v675 = vld [vmem:[%s351 + $0x10] sm:$0xf]
      %v676 = vld [vmem:[%s351 + $0x14] sm:$0xf]
      %v677 = vld [vmem:[%s351 + $0x18] sm:$0xf]
      %v678 = vld [vmem:[%s351 + $0x1c] sm:$0xf]
      %v679 = vld [vmem:[%s351 + $0x20] sm:$0xf]
      %v680 = vld [vmem:[%s351 + $0x24] sm:$0xf]
      %v681 = vld [vmem:[%s351 + $0x28] sm:$0xf]
      %v682 = vld [vmem:[%s351 + $0x2c] sm:$0xf]
      %v683 = vld [vmem:[%s351 + $0x30] sm:$0xf]
      %v684 = vld [vmem:[%s351 + $0x34] sm:$0xf]
      %v685 = vld [vmem:[%s351 + $0x38] sm:$0xf]
      %v686 = vld [vmem:[%s351 + $0x3c] sm:$0xf]
      %v687 = vld [vmem:[%s357] sm:$0xf]
      %v688 = vld [vmem:[%s357 + $0x4] sm:$0xf]
      %v705 = vunpack.c.l.b16 %v671
      %v706 = vunpack.c.l.b16 %v672
      %v707 = vunpack.c.l.b16 %v673
      %v708 = vunpack.c.l.b16 %v674
      %v709 = vunpack.c.l.b16 %v675
      %v710 = vunpack.c.l.b16 %v676
      %v711 = vunpack.c.l.b16 %v677
      %v712 = vunpack.c.l.b16 %v678
      %v713 = vunpack.c.l.b16 %v679
      %v714 = vunpack.c.l.b16 %v680
      %v715 = vunpack.c.l.b16 %v681
      %v716 = vunpack.c.l.b16 %v682
      %v717 = vunpack.c.l.b16 %v683
      %v718 = vunpack.c.l.b16 %v684
      %v719 = vunpack.c.l.b16 %v685
      %v720 = vunpack.c.l.b16 %v686
      %v721 = vpack.c.b16 %v706, %v705
      %v722 = vpack.c.b16 %v708, %v707
      %v723 = vpack.c.b16 %v710, %v709
      %v724 = vpack.c.b16 %v712, %v711
      %v725 = vpack.c.b16 %v714, %v713
      %v726 = vpack.c.b16 %v716, %v715
      %v727 = vpack.c.b16 %v718, %v717
      %v728 = vpack.c.b16 %v720, %v719
      %v731 = vunpack.c.l.b16 %v687
      %v732 = vunpack.c.l.b16 %v688
      %v733 = vpack.c.b16 %v732, %v731
      %v736 = vsel %vm450, %v721, 0
      %v739 = vsel %vm450, %v722, 0
      %v742 = vsel %vm450, %v723, 0
      %v745 = vsel %vm450, %v724, 0
      %v748 = vsel %vm450, %v725, 0
      %v751 = vsel %vm450, %v726, 0
      %v754 = vsel %vm450, %v727, 0
      %v757 = vsel %vm450, %v728, 0
      %759 = vmatpush.bf16.msra.mxu0 0
      %760 = vmatpush.bf16.msra.mxu0 0
      %761 = vmatpush.bf16.msra.mxu0 0
      %762 = vmatpush.bf16.msra.mxu0 0
      %763 = vmatpush.bf16.msra.mxu0 0
      %764 = vmatpush.bf16.msra.mxu0 0
      %765 = vmatpush.bf16.msra.mxu0 0
      %766 = vmatpush.bf16.msra.mxu0 %v733
      %767 = vmatmul.bf16.gmra.mxu0 %v736
      %v768 = vpop.f32.mrf.mxu0
      %v769 = vadd.f32 0.0, %v768
      %v770 = vpop.f32.mrf.mxu0
      %v771 = vadd.f32 0.0, %v770
      %772 = vmatmul.bf16.gmra.mxu0 %v739
      %v773 = vpop.f32.mrf.mxu0
      %v774 = vadd.f32 0.0, %v773
      %v775 = vpop.f32.mrf.mxu0
      %v776 = vadd.f32 0.0, %v775
      %777 = vmatmul.bf16.gmra.mxu0 %v742
      %v778 = vpop.f32.mrf.mxu0
      %v779 = vadd.f32 0.0, %v778
      %v780 = vpop.f32.mrf.mxu0
      %v781 = vadd.f32 0.0, %v780
      %782 = vmatmul.bf16.gmra.mxu0 %v745
      %v783 = vpop.f32.mrf.mxu0
      %v784 = vadd.f32 0.0, %v783
      %v785 = vpop.f32.mrf.mxu0
      %v786 = vadd.f32 0.0, %v785
      %787 = vmatmul.bf16.gmra.mxu0 %v748
      %v788 = vpop.f32.mrf.mxu0
      %v789 = vadd.f32 0.0, %v788
      %v790 = vpop.f32.mrf.mxu0
      %v791 = vadd.f32 0.0, %v790
      %792 = vmatmul.bf16.gmra.mxu0 %v751
      %v793 = vpop.f32.mrf.mxu0
      %v794 = vadd.f32 0.0, %v793
      %v795 = vpop.f32.mrf.mxu0
      %v796 = vadd.f32 0.0, %v795
      %797 = vmatmul.bf16.gmra.mxu0 %v754
      %v798 = vpop.f32.mrf.mxu0
      %v799 = vadd.f32 0.0, %v798
      %v800 = vpop.f32.mrf.mxu0
      %v801 = vadd.f32 0.0, %v800
      %802 = vmatmul.bf16.gmra.mxu0 %v757
      %v803 = vpop.f32.mrf.mxu0
      %v804 = vadd.f32 0.0, %v803
      %v805 = vpop.f32.mrf.mxu0
      %v806 = vadd.f32 0.0, %v805
      %807 = vdwg.mxu0
      %v808 = vadd.f32 %v485, %v769
      %v809 = vadd.f32 %v487, %v771
      %v810 = vadd.f32 %v490, %v774
      %v811 = vadd.f32 %v492, %v776
      %v812 = vadd.f32 %v495, %v779
      %v813 = vadd.f32 %v497, %v781
      %v814 = vadd.f32 %v500, %v784
      %v815 = vadd.f32 %v502, %v786
      %v816 = vadd.f32 %v505, %v789
      %v817 = vadd.f32 %v507, %v791
      %v818 = vadd.f32 %v510, %v794
      %v819 = vadd.f32 %v512, %v796
      %v820 = vadd.f32 %v515, %v799
      %v821 = vadd.f32 %v517, %v801
      %v822 = vadd.f32 %v520, %v804
      %v823 = vadd.f32 %v522, %v806
      %v824 = vld [vmem:[%s4] sm:$0x1]
      %v826 = vperm.slane %v824, 0
      %v828 = vmul.f32 %v808, %v826
      %v829 = vmul.f32 %v809, %v826
      %v830 = vmul.f32 %v810, %v826
      %v831 = vmul.f32 %v811, %v826
      %v832 = vmul.f32 %v812, %v826
      %v833 = vmul.f32 %v813, %v826
      %v834 = vmul.f32 %v814, %v826
      %v835 = vmul.f32 %v815, %v826
      %v836 = vmul.f32 %v816, %v826
      %v837 = vmul.f32 %v817, %v826
      %v838 = vmul.f32 %v818, %v826
      %v839 = vmul.f32 %v819, %v826
      %v840 = vmul.f32 %v820, %v826
      %v841 = vmul.f32 %v821, %v826
      %v842 = vmul.f32 %v822, %v826
      %v843 = vmul.f32 %v823, %v826
      %v844 = vld [vmem:[%s5] sm:$0x1]
      %v846 = vperm.slane %v844, 0
      %v848 = vadd.f32 %v828, %v846
      %v849 = vadd.f32 %v829, %v846
      %v850 = vadd.f32 %v830, %v846
      %v851 = vadd.f32 %v831, %v846
      %v852 = vadd.f32 %v832, %v846
      %v853 = vadd.f32 %v833, %v846
      %v854 = vadd.f32 %v834, %v846
      %v855 = vadd.f32 %v835, %v846
      %v856 = vadd.f32 %v836, %v846
      %v857 = vadd.f32 %v837, %v846
      %v858 = vadd.f32 %v838, %v846
      %v859 = vadd.f32 %v839, %v846
      %v860 = vadd.f32 %v840, %v846
      %v861 = vadd.f32 %v841, %v846
      %v862 = vadd.f32 %v842, %v846
      %v863 = vadd.f32 %v843, %v846
      %v864 = vmax.f32 %v848, 0.0
      %v865 = vmax.f32 %v849, 0.0
      %v866 = vmax.f32 %v850, 0.0
      %v867 = vmax.f32 %v851, 0.0
      %v868 = vmax.f32 %v852, 0.0
      %v869 = vmax.f32 %v853, 0.0
      %v870 = vmax.f32 %v854, 0.0
      %v871 = vmax.f32 %v855, 0.0
      %v872 = vmax.f32 %v856, 0.0
      %v873 = vmax.f32 %v857, 0.0
      %v874 = vmax.f32 %v858, 0.0
      %v875 = vmax.f32 %v859, 0.0
      %v876 = vmax.f32 %v860, 0.0
      %v877 = vmax.f32 %v861, 0.0
      %v878 = vmax.f32 %v862, 0.0
      %v879 = vmax.f32 %v863, 0.0
      %s880 = scalar_lea.vmem %s351, 64
      %v881 = vld [vmem:[%s880] sm:$0xf]
      %v882 = vld [vmem:[%s880 + $0x4] sm:$0xf]
      %v883 = vld [vmem:[%s880 + $0x8] sm:$0xf]
      %v884 = vld [vmem:[%s880 + $0xc] sm:$0xf]
      %v885 = vld [vmem:[%s880 + $0x10] sm:$0xf]
      %v886 = vld [vmem:[%s880 + $0x14] sm:$0xf]
      %v887 = vld [vmem:[%s880 + $0x18] sm:$0xf]
      %v888 = vld [vmem:[%s880 + $0x1c] sm:$0xf]
      %v889 = vld [vmem:[%s880 + $0x20] sm:$0xf]
      %v890 = vld [vmem:[%s880 + $0x24] sm:$0xf]
      %v891 = vld [vmem:[%s880 + $0x28] sm:$0xf]
      %v892 = vld [vmem:[%s880 + $0x2c] sm:$0xf]
      %v893 = vld [vmem:[%s880 + $0x30] sm:$0xf]
      %v894 = vld [vmem:[%s880 + $0x34] sm:$0xf]
      %v895 = vld [vmem:[%s880 + $0x38] sm:$0xf]
      %v896 = vld [vmem:[%s880 + $0x3c] sm:$0xf]
      %s897 = scalar_lea.vmem %s357, 8
      %v898 = vld [vmem:[%s897] sm:$0xf]
      %v899 = vld [vmem:[%s897 + $0x4] sm:$0xf]
      %v916 = vunpack.c.l.b16 %v881
      %v917 = vunpack.c.l.b16 %v882
      %v918 = vunpack.c.l.b16 %v883
      %v919 = vunpack.c.l.b16 %v884
      %v920 = vunpack.c.l.b16 %v885
      %v921 = vunpack.c.l.b16 %v886
      %v922 = vunpack.c.l.b16 %v887
      %v923 = vunpack.c.l.b16 %v888
      %v924 = vunpack.c.l.b16 %v889
      %v925 = vunpack.c.l.b16 %v890
      %v926 = vunpack.c.l.b16 %v891
      %v927 = vunpack.c.l.b16 %v892
      %v928 = vunpack.c.l.b16 %v893
      %v929 = vunpack.c.l.b16 %v894
      %v930 = vunpack.c.l.b16 %v895
      %v931 = vunpack.c.l.b16 %v896
      %v932 = vpack.c.b16 %v917, %v916
      %v933 = vpack.c.b16 %v919, %v918
      %v934 = vpack.c.b16 %v921, %v920
      %v935 = vpack.c.b16 %v923, %v922
      %v936 = vpack.c.b16 %v925, %v924
      %v937 = vpack.c.b16 %v927, %v926
      %v938 = vpack.c.b16 %v929, %v928
      %v939 = vpack.c.b16 %v931, %v930
      %v942 = vunpack.c.l.b16 %v898
      %v943 = vunpack.c.l.b16 %v899
      %v944 = vpack.c.b16 %v943, %v942
      %v947 = vsel %vm450, %v932, 0
      %v950 = vsel %vm450, %v933, 0
      %v953 = vsel %vm450, %v934, 0
      %v956 = vsel %vm450, %v935, 0
      %v959 = vsel %vm450, %v936, 0
      %v962 = vsel %vm450, %v937, 0
      %v965 = vsel %vm450, %v938, 0
      %v968 = vsel %vm450, %v939, 0
      %970 = vmatpush.bf16.msra.mxu0 0
      %971 = vmatpush.bf16.msra.mxu0 0
      %972 = vmatpush.bf16.msra.mxu0 0
      %973 = vmatpush.bf16.msra.mxu0 0
      %974 = vmatpush.bf16.msra.mxu0 0
      %975 = vmatpush.bf16.msra.mxu0 0
      %976 = vmatpush.bf16.msra.mxu0 0
      %977 = vmatpush.bf16.msra.mxu0 %v944
      %978 = vmatmul.bf16.gmra.mxu0 %v947
      %v979 = vpop.f32.mrf.mxu0
      %v980 = vadd.f32 0.0, %v979
      %v981 = vpop.f32.mrf.mxu0
      %v982 = vadd.f32 0.0, %v981
      %983 = vmatmul.bf16.gmra.mxu0 %v950
      %v984 = vpop.f32.mrf.mxu0
      %v985 = vadd.f32 0.0, %v984
      %v986 = vpop.f32.mrf.mxu0
      %v987 = vadd.f32 0.0, %v986
      %988 = vmatmul.bf16.gmra.mxu0 %v953
      %v989 = vpop.f32.mrf.mxu0
      %v990 = vadd.f32 0.0, %v989
      %v991 = vpop.f32.mrf.mxu0
      %v992 = vadd.f32 0.0, %v991
      %993 = vmatmul.bf16.gmra.mxu0 %v956
      %v994 = vpop.f32.mrf.mxu0
      %v995 = vadd.f32 0.0, %v994
      %v996 = vpop.f32.mrf.mxu0
      %v997 = vadd.f32 0.0, %v996
      %998 = vmatmul.bf16.gmra.mxu0 %v959
      %v999 = vpop.f32.mrf.mxu0
      %v1000 = vadd.f32 0.0, %v999
      %v1001 = vpop.f32.mrf.mxu0
      %v1002 = vadd.f32 0.0, %v1001
      %1003 = vmatmul.bf16.gmra.mxu0 %v962
      %v1004 = vpop.f32.mrf.mxu0
      %v1005 = vadd.f32 0.0, %v1004
      %v1006 = vpop.f32.mrf.mxu0
      %v1007 = vadd.f32 0.0, %v1006
      %1008 = vmatmul.bf16.gmra.mxu0 %v965
      %v1009 = vpop.f32.mrf.mxu0
      %v1010 = vadd.f32 0.0, %v1009
      %v1011 = vpop.f32.mrf.mxu0
      %v1012 = vadd.f32 0.0, %v1011
      %1013 = vmatmul.bf16.gmra.mxu0 %v968
      %v1014 = vpop.f32.mrf.mxu0
      %v1015 = vadd.f32 0.0, %v1014
      %v1016 = vpop.f32.mrf.mxu0
      %v1017 = vadd.f32 0.0, %v1016
      %1018 = vdwg.mxu0
      %v1019 = vadd.f32 %v534, %v980
      %v1020 = vadd.f32 %v536, %v982
      %v1021 = vadd.f32 %v539, %v985
      %v1022 = vadd.f32 %v541, %v987
      %v1023 = vadd.f32 %v544, %v990
      %v1024 = vadd.f32 %v546, %v992
      %v1025 = vadd.f32 %v549, %v995
      %v1026 = vadd.f32 %v551, %v997
      %v1027 = vadd.f32 %v554, %v1000
      %v1028 = vadd.f32 %v556, %v1002
      %v1029 = vadd.f32 %v559, %v1005
      %v1030 = vadd.f32 %v561, %v1007
      %v1031 = vadd.f32 %v564, %v1010
      %v1032 = vadd.f32 %v566, %v1012
      %v1033 = vadd.f32 %v569, %v1015
      %v1034 = vadd.f32 %v571, %v1017
      %v1035 = vld [vmem:[%s4 + $0x1] sm:$0x1]
      %v1037 = vperm.slane %v1035, 0
      %v1039 = vmul.f32 %v1019, %v1037
      %v1040 = vmul.f32 %v1020, %v1037
      %v1041 = vmul.f32 %v1021, %v1037
      %v1042 = vmul.f32 %v1022, %v1037
      %v1043 = vmul.f32 %v1023, %v1037
      %v1044 = vmul.f32 %v1024, %v1037
      %v1045 = vmul.f32 %v1025, %v1037
      %v1046 = vmul.f32 %v1026, %v1037
      %v1047 = vmul.f32 %v1027, %v1037
      %v1048 = vmul.f32 %v1028, %v1037
      %v1049 = vmul.f32 %v1029, %v1037
      %v1050 = vmul.f32 %v1030, %v1037
      %v1051 = vmul.f32 %v1031, %v1037
      %v1052 = vmul.f32 %v1032, %v1037
      %v1053 = vmul.f32 %v1033, %v1037
      %v1054 = vmul.f32 %v1034, %v1037
      %v1055 = vld [vmem:[%s5 + $0x1] sm:$0x1]
      %v1057 = vperm.slane %v1055, 0
      %v1059 = vadd.f32 %v1039, %v1057
      %v1060 = vadd.f32 %v1040, %v1057
      %v1061 = vadd.f32 %v1041, %v1057
      %v1062 = vadd.f32 %v1042, %v1057
      %v1063 = vadd.f32 %v1043, %v1057
      %v1064 = vadd.f32 %v1044, %v1057
      %v1065 = vadd.f32 %v1045, %v1057
      %v1066 = vadd.f32 %v1046, %v1057
      %v1067 = vadd.f32 %v1047, %v1057
      %v1068 = vadd.f32 %v1048, %v1057
      %v1069 = vadd.f32 %v1049, %v1057
      %v1070 = vadd.f32 %v1050, %v1057
      %v1071 = vadd.f32 %v1051, %v1057
      %v1072 = vadd.f32 %v1052, %v1057
      %v1073 = vadd.f32 %v1053, %v1057
      %v1074 = vadd.f32 %v1054, %v1057
      %v1075 = vmax.f32 %v1059, 0.0
      %v1076 = vmax.f32 %v1060, 0.0
      %v1077 = vmax.f32 %v1061, 0.0
      %v1078 = vmax.f32 %v1062, 0.0
      %v1079 = vmax.f32 %v1063, 0.0
      %v1080 = vmax.f32 %v1064, 0.0
      %v1081 = vmax.f32 %v1065, 0.0
      %v1082 = vmax.f32 %v1066, 0.0
      %v1083 = vmax.f32 %v1067, 0.0
      %v1084 = vmax.f32 %v1068, 0.0
      %v1085 = vmax.f32 %v1069, 0.0
      %v1086 = vmax.f32 %v1070, 0.0
      %v1087 = vmax.f32 %v1071, 0.0
      %v1088 = vmax.f32 %v1072, 0.0
      %v1089 = vmax.f32 %v1073, 0.0
      %v1090 = vmax.f32 %v1074, 0.0
      %s1091 = scalar_lea.vmem %s351, 128
      %v1092 = vld [vmem:[%s1091] sm:$0xf]
      %v1093 = vld [vmem:[%s1091 + $0x4] sm:$0xf]
      %v1094 = vld [vmem:[%s1091 + $0x8] sm:$0xf]
      %v1095 = vld [vmem:[%s1091 + $0xc] sm:$0xf]
      %v1096 = vld [vmem:[%s1091 + $0x10] sm:$0xf]
      %v1097 = vld [vmem:[%s1091 + $0x14] sm:$0xf]
      %v1098 = vld [vmem:[%s1091 + $0x18] sm:$0xf]
      %v1099 = vld [vmem:[%s1091 + $0x1c] sm:$0xf]
      %v1100 = vld [vmem:[%s1091 + $0x20] sm:$0xf]
      %v1101 = vld [vmem:[%s1091 + $0x24] sm:$0xf]
      %v1102 = vld [vmem:[%s1091 + $0x28] sm:$0xf]
      %v1103 = vld [vmem:[%s1091 + $0x2c] sm:$0xf]
      %v1104 = vld [vmem:[%s1091 + $0x30] sm:$0xf]
      %v1105 = vld [vmem:[%s1091 + $0x34] sm:$0xf]
      %v1106 = vld [vmem:[%s1091 + $0x38] sm:$0xf]
      %v1107 = vld [vmem:[%s1091 + $0x3c] sm:$0xf]
      %s1108 = scalar_lea.vmem %s357, 16
      %v1109 = vld [vmem:[%s1108] sm:$0xf]
      %v1110 = vld [vmem:[%s1108 + $0x4] sm:$0xf]
      %v1127 = vunpack.c.l.b16 %v1092
      %v1128 = vunpack.c.l.b16 %v1093
      %v1129 = vunpack.c.l.b16 %v1094
      %v1130 = vunpack.c.l.b16 %v1095
      %v1131 = vunpack.c.l.b16 %v1096
      %v1132 = vunpack.c.l.b16 %v1097
      %v1133 = vunpack.c.l.b16 %v1098
      %v1134 = vunpack.c.l.b16 %v1099
      %v1135 = vunpack.c.l.b16 %v1100
      %v1136 = vunpack.c.l.b16 %v1101
      %v1137 = vunpack.c.l.b16 %v1102
      %v1138 = vunpack.c.l.b16 %v1103
      %v1139 = vunpack.c.l.b16 %v1104
      %v1140 = vunpack.c.l.b16 %v1105
      %v1141 = vunpack.c.l.b16 %v1106
      %v1142 = vunpack.c.l.b16 %v1107
      %v1143 = vpack.c.b16 %v1128, %v1127
      %v1144 = vpack.c.b16 %v1130, %v1129
      %v1145 = vpack.c.b16 %v1132, %v1131
      %v1146 = vpack.c.b16 %v1134, %v1133
      %v1147 = vpack.c.b16 %v1136, %v1135
      %v1148 = vpack.c.b16 %v1138, %v1137
      %v1149 = vpack.c.b16 %v1140, %v1139
      %v1150 = vpack.c.b16 %v1142, %v1141
      %v1153 = vunpack.c.l.b16 %v1109
      %v1154 = vunpack.c.l.b16 %v1110
      %v1155 = vpack.c.b16 %v1154, %v1153
      %v1158 = vsel %vm450, %v1143, 0
      %v1161 = vsel %vm450, %v1144, 0
      %v1164 = vsel %vm450, %v1145, 0
      %v1167 = vsel %vm450, %v1146, 0
      %v1170 = vsel %vm450, %v1147, 0
      %v1173 = vsel %vm450, %v1148, 0
      %v1176 = vsel %vm450, %v1149, 0
      %v1179 = vsel %vm450, %v1150, 0
      %1181 = vmatpush.bf16.msra.mxu0 0
      %1182 = vmatpush.bf16.msra.mxu0 0
      %1183 = vmatpush.bf16.msra.mxu0 0
      %1184 = vmatpush.bf16.msra.mxu0 0
      %1185 = vmatpush.bf16.msra.mxu0 0
      %1186 = vmatpush.bf16.msra.mxu0 0
      %1187 = vmatpush.bf16.msra.mxu0 0
      %1188 = vmatpush.bf16.msra.mxu0 %v1155
      %1189 = vmatmul.bf16.gmra.mxu0 %v1158
      %v1190 = vpop.f32.mrf.mxu0
      %v1191 = vadd.f32 0.0, %v1190
      %v1192 = vpop.f32.mrf.mxu0
      %v1193 = vadd.f32 0.0, %v1192
      %1194 = vmatmul.bf16.gmra.mxu0 %v1161
      %v1195 = vpop.f32.mrf.mxu0
      %v1196 = vadd.f32 0.0, %v1195
      %v1197 = vpop.f32.mrf.mxu0
      %v1198 = vadd.f32 0.0, %v1197
      %1199 = vmatmul.bf16.gmra.mxu0 %v1164
      %v1200 = vpop.f32.mrf.mxu0
      %v1201 = vadd.f32 0.0, %v1200
      %v1202 = vpop.f32.mrf.mxu0
      %v1203 = vadd.f32 0.0, %v1202
      %1204 = vmatmul.bf16.gmra.mxu0 %v1167
      %v1205 = vpop.f32.mrf.mxu0
      %v1206 = vadd.f32 0.0, %v1205
      %v1207 = vpop.f32.mrf.mxu0
      %v1208 = vadd.f32 0.0, %v1207
      %1209 = vmatmul.bf16.gmra.mxu0 %v1170
      %v1210 = vpop.f32.mrf.mxu0
      %v1211 = vadd.f32 0.0, %v1210
      %v1212 = vpop.f32.mrf.mxu0
      %v1213 = vadd.f32 0.0, %v1212
      %1214 = vmatmul.bf16.gmra.mxu0 %v1173
      %v1215 = vpop.f32.mrf.mxu0
      %v1216 = vadd.f32 0.0, %v1215
      %v1217 = vpop.f32.mrf.mxu0
      %v1218 = vadd.f32 0.0, %v1217
      %1219 = vmatmul.bf16.gmra.mxu0 %v1176
      %v1220 = vpop.f32.mrf.mxu0
      %v1221 = vadd.f32 0.0, %v1220
      %v1222 = vpop.f32.mrf.mxu0
      %v1223 = vadd.f32 0.0, %v1222
      %1224 = vmatmul.bf16.gmra.mxu0 %v1179
      %v1225 = vpop.f32.mrf.mxu0
      %v1226 = vadd.f32 0.0, %v1225
      %v1227 = vpop.f32.mrf.mxu0
      %v1228 = vadd.f32 0.0, %v1227
      %1229 = vdwg.mxu0
      %v1230 = vadd.f32 %v583, %v1191
      %v1231 = vadd.f32 %v585, %v1193
      %v1232 = vadd.f32 %v588, %v1196
      %v1233 = vadd.f32 %v590, %v1198
      %v1234 = vadd.f32 %v593, %v1201
      %v1235 = vadd.f32 %v595, %v1203
      %v1236 = vadd.f32 %v598, %v1206
      %v1237 = vadd.f32 %v600, %v1208
      %v1238 = vadd.f32 %v603, %v1211
      %v1239 = vadd.f32 %v605, %v1213
      %v1240 = vadd.f32 %v608, %v1216
      %v1241 = vadd.f32 %v610, %v1218
      %v1242 = vadd.f32 %v613, %v1221
      %v1243 = vadd.f32 %v615, %v1223
      %v1244 = vadd.f32 %v618, %v1226
      %v1245 = vadd.f32 %v620, %v1228
      %v1246 = vld [vmem:[%s4 + $0x2] sm:$0x1]
      %v1248 = vperm.slane %v1246, 0
      %v1250 = vmul.f32 %v1230, %v1248
      %v1251 = vmul.f32 %v1231, %v1248
      %v1252 = vmul.f32 %v1232, %v1248
      %v1253 = vmul.f32 %v1233, %v1248
      %v1254 = vmul.f32 %v1234, %v1248
      %v1255 = vmul.f32 %v1235, %v1248
      %v1256 = vmul.f32 %v1236, %v1248
      %v1257 = vmul.f32 %v1237, %v1248
      %v1258 = vmul.f32 %v1238, %v1248
      %v1259 = vmul.f32 %v1239, %v1248
      %v1260 = vmul.f32 %v1240, %v1248
      %v1261 = vmul.f32 %v1241, %v1248
      %v1262 = vmul.f32 %v1242, %v1248
      %v1263 = vmul.f32 %v1243, %v1248
      %v1264 = vmul.f32 %v1244, %v1248
      %v1265 = vmul.f32 %v1245, %v1248
      %v1266 = vld [vmem:[%s5 + $0x2] sm:$0x1]
      %v1268 = vperm.slane %v1266, 0
      %v1270 = vadd.f32 %v1250, %v1268
      %v1271 = vadd.f32 %v1251, %v1268
      %v1272 = vadd.f32 %v1252, %v1268
      %v1273 = vadd.f32 %v1253, %v1268
      %v1274 = vadd.f32 %v1254, %v1268
      %v1275 = vadd.f32 %v1255, %v1268
      %v1276 = vadd.f32 %v1256, %v1268
      %v1277 = vadd.f32 %v1257, %v1268
      %v1278 = vadd.f32 %v1258, %v1268
      %v1279 = vadd.f32 %v1259, %v1268
      %v1280 = vadd.f32 %v1260, %v1268
      %v1281 = vadd.f32 %v1261, %v1268
      %v1282 = vadd.f32 %v1262, %v1268
      %v1283 = vadd.f32 %v1263, %v1268
      %v1284 = vadd.f32 %v1264, %v1268
      %v1285 = vadd.f32 %v1265, %v1268
      %v1286 = vmax.f32 %v1270, 0.0
      %v1287 = vmax.f32 %v1271, 0.0
      %v1288 = vmax.f32 %v1272, 0.0
      %v1289 = vmax.f32 %v1273, 0.0
      %v1290 = vmax.f32 %v1274, 0.0
      %v1291 = vmax.f32 %v1275, 0.0
      %v1292 = vmax.f32 %v1276, 0.0
      %v1293 = vmax.f32 %v1277, 0.0
      %v1294 = vmax.f32 %v1278, 0.0
      %v1295 = vmax.f32 %v1279, 0.0
      %v1296 = vmax.f32 %v1280, 0.0
      %v1297 = vmax.f32 %v1281, 0.0
      %v1298 = vmax.f32 %v1282, 0.0
      %v1299 = vmax.f32 %v1283, 0.0
      %v1300 = vmax.f32 %v1284, 0.0
      %v1301 = vmax.f32 %v1285, 0.0
      %v1302 = vld [vmem:[%s4 + $0x3] sm:$0x1]
      %v1304 = vperm.slane %v1302, 0
      %v1306 = vmul.f32 %v632, %v1304
      %v1307 = vmul.f32 %v634, %v1304
      %v1308 = vmul.f32 %v637, %v1304
      %v1309 = vmul.f32 %v639, %v1304
      %v1310 = vmul.f32 %v642, %v1304
      %v1311 = vmul.f32 %v644, %v1304
      %v1312 = vmul.f32 %v647, %v1304
      %v1313 = vmul.f32 %v649, %v1304
      %v1314 = vmul.f32 %v652, %v1304
      %v1315 = vmul.f32 %v654, %v1304
      %v1316 = vmul.f32 %v657, %v1304
      %v1317 = vmul.f32 %v659, %v1304
      %v1318 = vmul.f32 %v662, %v1304
      %v1319 = vmul.f32 %v664, %v1304
      %v1320 = vmul.f32 %v667, %v1304
      %v1321 = vmul.f32 %v669, %v1304
      %v1322 = vld [vmem:[%s5 + $0x3] sm:$0x1]
      %v1324 = vperm.slane %v1322, 0
      %v1326 = vadd.f32 %v1306, %v1324
      %v1327 = vadd.f32 %v1307, %v1324
      %v1328 = vadd.f32 %v1308, %v1324
      %v1329 = vadd.f32 %v1309, %v1324
      %v1330 = vadd.f32 %v1310, %v1324
      %v1331 = vadd.f32 %v1311, %v1324
      %v1332 = vadd.f32 %v1312, %v1324
      %v1333 = vadd.f32 %v1313, %v1324
      %v1334 = vadd.f32 %v1314, %v1324
      %v1335 = vadd.f32 %v1315, %v1324
      %v1336 = vadd.f32 %v1316, %v1324
      %v1337 = vadd.f32 %v1317, %v1324
      %v1338 = vadd.f32 %v1318, %v1324
      %v1339 = vadd.f32 %v1319, %v1324
      %v1340 = vadd.f32 %v1320, %v1324
      %v1341 = vadd.f32 %v1321, %v1324
      %v1342 = vmax.f32 %v1326, 0.0
      %v1343 = vmax.f32 %v1327, 0.0
      %v1344 = vmax.f32 %v1328, 0.0
      %v1345 = vmax.f32 %v1329, 0.0
      %v1346 = vmax.f32 %v1330, 0.0
      %v1347 = vmax.f32 %v1331, 0.0
      %v1348 = vmax.f32 %v1332, 0.0
      %v1349 = vmax.f32 %v1333, 0.0
      %v1350 = vmax.f32 %v1334, 0.0
      %v1351 = vmax.f32 %v1335, 0.0
      %v1352 = vmax.f32 %v1336, 0.0
      %v1353 = vmax.f32 %v1337, 0.0
      %v1354 = vmax.f32 %v1338, 0.0
      %v1355 = vmax.f32 %v1339, 0.0
      %v1356 = vmax.f32 %v1340, 0.0
      %v1357 = vmax.f32 %v1341, 0.0
      %v1358 = vpack.c.bf16 %v1075, %v864
      %v1359 = vpack.c.bf16 %v1342, %v1286
      %v1360 = vpack.c.bf16 %v1076, %v865
      %v1361 = vpack.c.bf16 %v1343, %v1287
      %v1362 = vpack.c.bf16 %v1077, %v866
      %v1363 = vpack.c.bf16 %v1344, %v1288
      %v1364 = vpack.c.bf16 %v1078, %v867
      %v1365 = vpack.c.bf16 %v1345, %v1289
      %v1366 = vpack.c.bf16 %v1079, %v868
      %v1367 = vpack.c.bf16 %v1346, %v1290
      %v1368 = vpack.c.bf16 %v1080, %v869
      %v1369 = vpack.c.bf16 %v1347, %v1291
      %v1370 = vpack.c.bf16 %v1081, %v870
      %v1371 = vpack.c.bf16 %v1348, %v1292
      %v1372 = vpack.c.bf16 %v1082, %v871
      %v1373 = vpack.c.bf16 %v1349, %v1293
      %v1374 = vpack.c.bf16 %v1083, %v872
      %v1375 = vpack.c.bf16 %v1350, %v1294
      %v1376 = vpack.c.bf16 %v1084, %v873
      %v1377 = vpack.c.bf16 %v1351, %v1295
      %v1378 = vpack.c.bf16 %v1085, %v874
      %v1379 = vpack.c.bf16 %v1352, %v1296
      %v1380 = vpack.c.bf16 %v1086, %v875
      %v1381 = vpack.c.bf16 %v1353, %v1297
      %v1382 = vpack.c.bf16 %v1087, %v876
      %v1383 = vpack.c.bf16 %v1354, %v1298
      %v1384 = vpack.c.bf16 %v1088, %v877
      %v1385 = vpack.c.bf16 %v1355, %v1299
      %v1386 = vpack.c.bf16 %v1089, %v878
      %v1387 = vpack.c.bf16 %v1356, %v1300
      %v1388 = vpack.c.bf16 %v1090, %v879
      %v1389 = vpack.c.bf16 %v1357, %v1301
      %1390 = vst [vmem:[%s367] sm:$0xff] %v1358
      %1391 = vst [vmem:[%s367 + $0x8] sm:$0xff] %v1359
      %1392 = vst [vmem:[%s367 + $0x10] sm:$0xff] %v1360
      %1393 = vst [vmem:[%s367 + $0x18] sm:$0xff] %v1361
      %1394 = vst [vmem:[%s367 + $0x20] sm:$0xff] %v1362
      %1395 = vst [vmem:[%s367 + $0x28] sm:$0xff] %v1363
      %1396 = vst [vmem:[%s367 + $0x30] sm:$0xff] %v1364
      %1397 = vst [vmem:[%s367 + $0x38] sm:$0xff] %v1365
      %1398 = vst [vmem:[%s367 + $0x40] sm:$0xff] %v1366
      %1399 = vst [vmem:[%s367 + $0x48] sm:$0xff] %v1367
      %1400 = vst [vmem:[%s367 + $0x50] sm:$0xff] %v1368
      %1401 = vst [vmem:[%s367 + $0x58] sm:$0xff] %v1369
      %1402 = vst [vmem:[%s367 + $0x60] sm:$0xff] %v1370
      %1403 = vst [vmem:[%s367 + $0x68] sm:$0xff] %v1371
      %1404 = vst [vmem:[%s367 + $0x70] sm:$0xff] %v1372
      %1405 = vst [vmem:[%s367 + $0x78] sm:$0xff] %v1373
      %1406 = vst [vmem:[%s367 + $0x80] sm:$0xff] %v1374
      %1407 = vst [vmem:[%s367 + $0x88] sm:$0xff] %v1375
      %1408 = vst [vmem:[%s367 + $0x90] sm:$0xff] %v1376
      %1409 = vst [vmem:[%s367 + $0x98] sm:$0xff] %v1377
      %1410 = vst [vmem:[%s367 + $0xa0] sm:$0xff] %v1378
      %1411 = vst [vmem:[%s367 + $0xa8] sm:$0xff] %v1379
      %1412 = vst [vmem:[%s367 + $0xb0] sm:$0xff] %v1380
      %1413 = vst [vmem:[%s367 + $0xb8] sm:$0xff] %v1381
      %1414 = vst [vmem:[%s367 + $0xc0] sm:$0xff] %v1382
      %1415 = vst [vmem:[%s367 + $0xc8] sm:$0xff] %v1383
      %1416 = vst [vmem:[%s367 + $0xd0] sm:$0xff] %v1384
      %1417 = vst [vmem:[%s367 + $0xd8] sm:$0xff] %v1385
      %1418 = vst [vmem:[%s367 + $0xe0] sm:$0xff] %v1386
      %1419 = vst [vmem:[%s367 + $0xe8] sm:$0xff] %v1387
      %1420 = vst [vmem:[%s367 + $0xf0] sm:$0xff] %v1388
      %1421 = vst [vmem:[%s367 + $0xf8] sm:$0xff] %v1389
      %s1422 = smul.u32 16, %s22
      %p1423 = scmp.lt.s32.totalorder %s21, 3
      %s1424 = scalar_select %p1423, %s21, 3
      %p1425 = scmp.lt.s32.totalorder %s1422, 15
      %s1426 = scalar_select %p1425, %s1422, 15
      %s1427 = smul.addr %s1426, 4
      %s1428 = smul.addr %s1424, 64
      %s1429 = sadd.s32 %s1427, %s1428
      %s1430 = smul.addr %s1429, 4
      %s1431 = scalar_lea.vmem %s6, %s1430
      // Predicated region
      $region45: #{_star_layer_forward.3} parent=43 // pred_check
        %p1432 = pneg %p199
      $region46: #{_star_layer_forward.3} parent=43 // pred_check_branch
        %1434 = sbr.rel (%p1432) target = $region48
      $region47: #{_star_layer_forward.3} parent=43 // pred_region
        %s1435 = smul.u32 16, %s22
      $region48: #{_star_layer_forward.3} parent=43 // pred_fallthru
        _
    $region44: #{_star_layer_forward.3} parent=5 // pred_fallthru
      _
    %p1436 = scmp.le.s32.totalorder 2, %s12
    // Predicated region
    $region49: #{_star_layer_forward.3} parent=5 // pred_check
      %p1437 = pneg %p1436
    $region50: #{_star_layer_forward.3} parent=5 // pred_check_branch
      %1439 = sbr.rel (%p1437) target = $region52
    $region51: #{_star_layer_forward.3} parent=5 // pred_region
      %s1440 = ssub.s32 %s12, 2
      // Predicated region
      $region53: #{_star_layer_forward.3} parent=51 // pred_check
        %p1441 = pneg %p205
      $region54: #{_star_layer_forward.3} parent=51 // pred_check_branch
        %1443 = sbr.rel (%p1441) target = $region56
      $region55: #{_star_layer_forward.3} parent=51 // pred_region
        %s1444 = smul.u32 16, %s24
        %p1445 = scmp.lt.s32.totalorder %s23, 3
        %s1446 = scalar_select %p1445, %s23, 3
        %p1447 = scmp.lt.s32.totalorder %s1444, 15
        %s1448 = scalar_select %p1447, %s1444, 15
        %s1449 = smul.addr %s1448, 4
        %s1450 = smul.addr %s1446, 64
        %s1451 = sadd.s32 %s1449, %s1450
        %s1452 = smul.addr %s1451, 4
        %s1453 = scalar_lea.vmem %s6, %s1452
      $region56: #{_star_layer_forward.3} parent=51 // pred_fallthru
        _
    $region52: #{_star_layer_forward.3} parent=5 // pred_fallthru
      _
  $region6: #{_star_layer_forward.3} parent=0 // loop_footer
    %s16 = sadd.s32 1, %s12
  $region7: #{_star_layer_forward.3} parent=0 // loop_footer_branch
    %11 = sbr.rel target = $region3
  $region8: #{_star_layer_forward.3} parent=0 // loop_exit
    _

</llo_original>
